<compile_context>
chip_gen: v7x
topology: tpu7x:2x2x1
jax: 0.10.0
libtpu: 0.0.40
codegen_flags: <defaults>
</compile_context>

<pallas_src>
import numpy as np
import jax
import jax.numpy as jnp
from jax import lax
from jax.experimental import pallas as pl
from jax.experimental.pallas import tpu as pltpu

_PAD = 128                      # lane-dense padded feature width
_NEG_INF = -1e30
_VMEM = pl.BlockSpec(memory_space=pltpu.MemorySpace.VMEM)


def _mm(a, b):
    """a @ b on the MXU, f32 in / f32 accumulation."""
    return jnp.dot(a, b, preferred_element_type=jnp.float32)


def _mm_t(a, b):
    """a @ b.T (contract last dims of both) on the MXU, f32 accumulation."""
    return lax.dot_general(a, b, (((1,), (1,)), ((), ())),
                           preferred_element_type=jnp.float32)


def _elu(x):
    # F.elu, alpha=1; clamp the exp arg so the unselected branch cannot overflow.
    return jnp.where(x > 0, x, jnp.exp(jnp.minimum(x, 0.0)) - 1.0)


def _attend(h, a_src_row, a_dst_col, adj_bias, exact=False):
    """STAGATE-style per-destination softmax over incoming edges, fused with the
    aggregation.  logits[i, j] = sigmoid(a_dst[i] + a_src[j]) + bias[i, j];
    softmax over sources j (bias is 0 on edge j->i, -1e30 elsewhere)."""
    logits = jax.nn.sigmoid(a_dst_col + a_src_row) + adj_bias       # (N, N)
    # sigmoid in (0,1) -> exp never overflows; off-edge logits underflow to 0,
    # so no compare/select and no row-max subtraction needed.
    e = jnp.exp(logits)                                             # (N, N)
    denom = jnp.sum(e, axis=1, keepdims=True) + 1e-16               # (N, 1)
    agg = _mm(e, h)                                                 # (N, 128)
    # zero in-degree rows: e == 0 everywhere -> agg == 0 -> out == 0 (matches
    # PyG semantics with add_self_loops=False).
    if exact:
        return agg / denom
    return agg * pl.reciprocal(denom, approx=True)


def gat_encoder_kernel(x_ref, adj_ref, w_ref, avec_ref, out_ref):
    adj_bias = adj_ref[...]                       # (N, N) additive mask
    x = x_ref[...]                                # (N, 128) zero-padded features

    # mask that zeroes the a_dst fold column (lane _PAD-1) of a packed projection
    lane_idx = lax.broadcasted_iota(jnp.int32, (1, _PAD), 1)
    keep = (lane_idx < (_PAD - 1)).astype(jnp.float32)              # (1, 128)

    def project(act, w):
        """act @ Wp.  Returns (h, a_dst_col) where h has the fold column zeroed."""
        hp = _mm(act, w)                          # (N, 128)
        a_dst = hp[:, _PAD - 1:_PAD]              # (N, 1) = h . a_dst
        return hp * keep, a_dst

    # ---- conv1 (records alpha1 = conv1.attentions, reused by conv3) ----
    h, a1_dst = project(x, w_ref[0])
    a1_src = _mm_t(avec_ref[0:1, :], h)           # (1, N) lane-dense row
    act = _elu(_attend(h, a1_src, a1_dst, adj_bias))

    # ---- conv1_2 ----
    h, a_dst = project(act, w_ref[1])
    a_src = _mm_t(avec_ref[1:2, :], h)
    act = _elu(_attend(h, a_src, a_dst, adj_bias))

    # ---- conv2 -> h2 (exact normalisation; externally visible) ----
    h, a_dst = project(act, w_ref[2])
    a_src = _mm_t(avec_ref[2:3, :], h)
    h2 = _attend(h, a_src, a_dst, adj_bias, exact=True)   # (N, 128), cols >= out_dim are 0
    out_ref[0] = h2

    # ---- conv3: lin = conv2.lin^T (contract the other axis of the packed W2;
    #      the a_dst fold column contributes nothing because h2[:,127] == 0),
    #      attention tied to conv1.attentions ----
    h3p = _mm_t(h2, w_ref[2])                     # (N, 128), cols >= num_hidden are 0
    h3 = _elu(_attend(h3p, a1_src, a1_dst, adj_bias))

    # ---- conv2_h (attention=False): plain linear ----
    out_ref[2] = _mm(h2, w_ref[3])                # (N, 128), cols >= out_dim are 0

    # ---- conv4 (attention=False): lin = conv1.lin^T ----
    out_ref[1] = _mm_t(h3, w_ref[0])              # (N, 128), cols >= in_dim are 0


def pack_gat_params(params):
    """Host-side, one-time packing: fold a_dst into an extra weight column and
    zero-pad everything to the 128-lane width so all in-kernel arrays are
    lane-dense.  Done once; the kernel only sees 2 parameter arrays."""
    W1, a1s, a1d = params["conv1"]
    W12, a12s, a12d = params["conv1_2"]
    W2, a2s, a2d = params["conv2"]
    W2h = params["conv2_h"]

    def pack_w(W, a_d=None):
        cin, cout = W.shape
        assert cin <= _PAD and cout <= _PAD - 1
        Wp = jnp.zeros((_PAD, _PAD), jnp.float32).at[:cin, :cout].set(W)
        if a_d is not None:
            Wp = Wp.at[:cin, _PAD - 1].set(W @ a_d.reshape(-1))
        return Wp

    wstack = jnp.stack([pack_w(W1, a1d), pack_w(W12, a12d),
                        pack_w(W2, a2d), pack_w(W2h)], axis=0)      # (4, 128, 128)

    avec = jnp.zeros((8, _PAD), jnp.float32)
    avec = avec.at[0, :a1s.shape[-1]].set(a1s.reshape(-1))
    avec = avec.at[1, :a12s.shape[-1]].set(a12s.reshape(-1))
    avec = avec.at[2, :a2s.shape[-1]].set(a2s.reshape(-1))          # (8, 128)

    return {"wstack": wstack, "avec": avec,
            "in_dim": W1.shape[0], "num_hidden": W1.shape[1], "out_dim": W2.shape[1]}


def gat_encoder_forward(features, adj_bias, packed):
    n, in_dim = features.shape
    out_dim = packed["out_dim"]
    n_pad = ((n + 7) // 8) * 8                                      # sublane multiple

    x_pad = jnp.zeros((n_pad, _PAD), jnp.float32).at[:n, :in_dim].set(features)
    adj_pad = jnp.full((n_pad, n_pad), _NEG_INF,
                       jnp.float32).at[:n, :n].set(adj_bias)

    # Whole problem (<1 MiB at these sizes) lives in VMEM; single invocation, no grid.
    slab = pl.pallas_call(
        gat_encoder_kernel,
        out_shape=jax.ShapeDtypeStruct((3, n_pad, _PAD), jnp.float32),
        in_specs=[_VMEM, _VMEM, _VMEM, _VMEM],
        out_specs=_VMEM,
    )(x_pad, adj_pad, packed["wstack"], packed["avec"])

    h2 = slab[0, :n, :out_dim]
    h4 = slab[1, :n, :in_dim]
    h_h = slab[2, :n, :out_dim]
    return h2, h4, h_h


def gat_reference(features, adj_bias, params):
    """Pure-JAX reference of the same dense formulation (for sanity checking)."""
    W1, a1s, a1d = params["conv1"]
    W12, a12s, a12d = params["conv1_2"]
    W2, a2s, a2d = params["conv2"]
    W2h = params["conv2_h"]

    def attend(h, asrc, adst, adj):
        logits = jax.nn.sigmoid(adst[:, None] + asrc[None, :]) + adj
        e = jnp.exp(logits)
        return (e @ h) / (e.sum(1, keepdims=True) + 1e-16)

    def gat(x, W, a_s, a_d, adj):
        h = x @ W
        asrc = h @ a_s.reshape(-1)
        adst = h @ a_d.reshape(-1)
        return attend(h, asrc, adst, adj), (asrc, adst)

    h1, alpha1 = gat(features, W1, a1s, a1d, adj_bias)
    h1 = jax.nn.elu(h1)
    h1b, _ = gat(h1, W12, a12s, a12d, adj_bias)
    h1b = jax.nn.elu(h1b)
    h2, _ = gat(h1b, W2, a2s, a2d, adj_bias)
    h3 = jax.nn.elu(attend(h2 @ W2.T, alpha1[0], alpha1[1], adj_bias))
    h_h = h2 @ W2h
    h4 = h3 @ W1.T
    return h2, h4, h_h


if __name__ == "__main__":
    N = 16
    in_dim, num_hidden, out_dim = 16, 32, 8

    key = jax.random.PRNGKey(0)
    ks = jax.random.split(key, 12)

    def xavier(k, shape, gain=1.414):
        std = gain * float(np.sqrt(2.0 / (shape[0] + shape[1])))
        return std * jax.random.normal(k, shape, jnp.float32)

    params = {
        # attention vectors as (1, C) rows
        "conv1":   (xavier(ks[0], (in_dim, num_hidden)),
                    xavier(ks[1], (1, num_hidden)), xavier(ks[2], (1, num_hidden))),
        "conv1_2": (xavier(ks[3], (num_hidden, num_hidden)),
                    xavier(ks[4], (1, num_hidden)), xavier(ks[5], (1, num_hidden))),
        "conv2":   (xavier(ks[6], (num_hidden, out_dim)),
                    xavier(ks[7], (1, out_dim)), xavier(ks[8], (1, out_dim))),
        "conv2_h": xavier(ks[9], (out_dim, out_dim)),
        # conv3 / conv4 weights are tied (W2^T / W1^T) inside the kernel;
        # conv3's attention is tied to conv1.attentions.
    }

    features = jax.random.normal(ks[10], (N, in_dim), jnp.float32)

    # deterministic small graph: ring + skip connections, both directions
    src, dst = [], []
    for i in range(N):
        for d in (1, 2, 5):
            j = (i + d) % N
            src += [i, j]
            dst += [j, i]
    edge_index = np.asarray([src, dst], dtype=np.int32)             # (2, E), E = 96
    # densify ONCE into an additive softmax bias: 0 where edge dst<-src exists,
    # -1e30 elsewhere.
    adj_bias_np = np.full((N, N), _NEG_INF, np.float32)
    adj_bias_np[edge_index[1], edge_index[0]] = 0.0
    adj_bias = jnp.asarray(adj_bias_np)

    packed = pack_gat_params(params)
    h2, h4, h_h = gat_encoder_forward(features, adj_bias, packed)
    jax.block_until_ready((h2, h4, h_h))

    assert h2.shape == (N, out_dim) and h4.shape == (N, in_dim) and h_h.shape == (N, out_dim)
    assert np.all(np.isfinite(np.asarray(h2)))
    assert np.all(np.isfinite(np.asarray(h4)))
    assert np.all(np.isfinite(np.asarray(h_h)))

    # sanity-check against the pure-JAX reference (tolerance covers the
    # approx-reciprocal EUP path and MXU f32 rounding)
    r2, r4, rh = gat_reference(features, adj_bias, params)
    for got, ref in ((h2, r2), (h4, r4), (h_h, rh)):
        err = float(np.max(np.abs(np.asarray(got) - np.asarray(ref))))
        scale = float(np.max(np.abs(np.asarray(ref)))) + 1e-6
        assert err <= 5e-2 * max(scale, 1.0), f"mismatch: max abs err {err}"

    print("KERNEL_OK")
</pallas_src>

<mosaic_0001>
module attributes {stable_mosaic.version = 11 : i64} {
  func.func @gat_encoder_kernel(%arg0: memref<16x128xf32, #tpu.memory_space<vmem>>, %arg1: memref<16x16xf32, #tpu.memory_space<vmem>>, %arg2: memref<4x128x128xf32, #tpu.memory_space<vmem>>, %arg3: memref<8x128xf32, #tpu.memory_space<vmem>>, %arg4: memref<3x16x128xf32, #tpu.memory_space<vmem>>) attributes {dimension_semantics = [], scalar_prefetch = 0 : i64, scratch_operands = 0 : i64, tpu.core_type = #tpu.core_type<tc>} {
    %c0 = arith.constant 0 : index
    %c0_0 = arith.constant 0 : index
    %0 = vector.load %arg1[%c0, %c0_0] : memref<16x16xf32, #tpu.memory_space<vmem>>, vector<16x16xf32>
    %c0_1 = arith.constant 0 : index
    %c0_2 = arith.constant 0 : index
    %1 = vector.load %arg0[%c0_1, %c0_2] : memref<16x128xf32, #tpu.memory_space<vmem>>, vector<16x128xf32>
    %2 = tpu.iota {dimensions = array<i32: 1>} : vector<1x128xi32>
    %c127_i32 = arith.constant 127 : i32
    %3 = vector.broadcast %c127_i32 : i32 to vector<1x128xi32>
    %4 = arith.cmpi slt, %2, %3 : vector<1x128xi32>
    %5 = arith.extui %4 : vector<1x128xi1> to vector<1x128xi32>
    %6 = arith.sitofp %5 : vector<1x128xi32> to vector<1x128xf32>
    %c0_3 = arith.constant 0 : index
    %c0_4 = arith.constant 0 : index
    %c0_5 = arith.constant 0 : index
    %7 = vector.load %arg2[%c0_3, %c0_4, %c0_5] : memref<4x128x128xf32, #tpu.memory_space<vmem>>, vector<1x128x128xf32>
    %8 = vector.shape_cast %7 : vector<1x128x128xf32> to vector<128x128xf32>
    %cst = arith.constant dense<0.000000e+00> : vector<16x128xf32>
    %9 = tpu.matmul %1, %8, %cst {dimension_numbers = #tpu.dot_dimension_numbers<[1], [0], [0], [1], [0, 0, 1, 1], [], []>} : vector<16x128xf32>, vector<128x128xf32>, vector<16x128xf32> -> vector<16x128xf32>
    %10 = vector.extract_strided_slice %9 {offsets = [0, 127], sizes = [16, 1], strides = [1, 1]} : vector<16x128xf32> to vector<16x1xf32>
    %11 = vector.broadcast %6 : vector<1x128xf32> to vector<16x128xf32>
    %12 = arith.mulf %9, %11 : vector<16x128xf32>
    %c0_6 = arith.constant 0 : index
    %c0_7 = arith.constant 0 : index
    %13 = vector.load %arg3[%c0_6, %c0_7] : memref<8x128xf32, #tpu.memory_space<vmem>>, vector<1x128xf32>
    %cst_8 = arith.constant dense<0.000000e+00> : vector<1x16xf32>
    %14 = tpu.matmul %13, %12, %cst_8 {dimension_numbers = #tpu.dot_dimension_numbers<[1], [1], [0], [0], [0, 0, 1, 0], [], []>} : vector<1x128xf32>, vector<16x128xf32>, vector<1x16xf32> -> vector<1x16xf32>
    %15 = vector.broadcast %10 : vector<16x1xf32> to vector<16x16xf32>
    %16 = vector.broadcast %14 : vector<1x16xf32> to vector<16x16xf32>
    %17 = arith.addf %15, %16 : vector<16x16xf32>
    %18 = arith.negf %17 : vector<16x16xf32>
    %19 = math.exp %18 : vector<16x16xf32>
    %cst_9 = arith.constant 1.000000e+00 : f32
    %20 = vector.broadcast %cst_9 : f32 to vector<16x16xf32>
    %21 = arith.addf %20, %19 : vector<16x16xf32>
    %22 = arith.divf %20, %21 : vector<16x16xf32>
    %23 = arith.addf %22, %0 : vector<16x16xf32>
    %24 = math.exp %23 : vector<16x16xf32>
    %cst_10 = arith.constant dense<0.000000e+00> : vector<16xf32>
    %25 = vector.multi_reduction <add>, %24, %cst_10 [1] : vector<16x16xf32> to vector<16xf32>
    %26 = vector.shape_cast %25 : vector<16xf32> to vector<16x1xf32>
    %cst_11 = arith.constant 1.000000e-16 : f32
    %27 = vector.broadcast %cst_11 : f32 to vector<16x1xf32>
    %28 = arith.addf %26, %27 : vector<16x1xf32>
    %cst_12 = arith.constant dense<0.000000e+00> : vector<16x128xf32>
    %29 = tpu.matmul %24, %12, %cst_12 {dimension_numbers = #tpu.dot_dimension_numbers<[1], [0], [0], [1], [0, 0, 1, 1], [], []>} : vector<16x16xf32>, vector<16x128xf32>, vector<16x128xf32> -> vector<16x128xf32>
    %30 = tpu.reciprocal %28 {approx = true} : vector<16x1xf32> -> vector<16x1xf32>
    %31 = vector.broadcast %30 : vector<16x1xf32> to vector<16x128xf32>
    %32 = arith.mulf %29, %31 : vector<16x128xf32>
    %cst_13 = arith.constant 0.000000e+00 : f32
    %33 = vector.broadcast %cst_13 : f32 to vector<16x128xf32>
    %34 = arith.cmpf ogt, %32, %33 : vector<16x128xf32>
    %cst_14 = arith.constant 0.000000e+00 : f32
    %35 = vector.broadcast %cst_14 : f32 to vector<16x128xf32>
    %36 = arith.minimumf %32, %35 : vector<16x128xf32>
    %37 = math.exp %36 : vector<16x128xf32>
    %cst_15 = arith.constant 1.000000e+00 : f32
    %38 = vector.broadcast %cst_15 : f32 to vector<16x128xf32>
    %39 = arith.subf %37, %38 : vector<16x128xf32>
    %40 = arith.select %34, %32, %39 : vector<16x128xi1>, vector<16x128xf32>
    %c1 = arith.constant 1 : index
    %c0_16 = arith.constant 0 : index
    %c0_17 = arith.constant 0 : index
    %41 = vector.load %arg2[%c1, %c0_16, %c0_17] : memref<4x128x128xf32, #tpu.memory_space<vmem>>, vector<1x128x128xf32>
    %42 = vector.shape_cast %41 : vector<1x128x128xf32> to vector<128x128xf32>
    %cst_18 = arith.constant dense<0.000000e+00> : vector<16x128xf32>
    %43 = tpu.matmul %40, %42, %cst_18 {dimension_numbers = #tpu.dot_dimension_numbers<[1], [0], [0], [1], [0, 0, 1, 1], [], []>} : vector<16x128xf32>, vector<128x128xf32>, vector<16x128xf32> -> vector<16x128xf32>
    %44 = vector.extract_strided_slice %43 {offsets = [0, 127], sizes = [16, 1], strides = [1, 1]} : vector<16x128xf32> to vector<16x1xf32>
    %45 = vector.broadcast %6 : vector<1x128xf32> to vector<16x128xf32>
    %46 = arith.mulf %43, %45 : vector<16x128xf32>
    %c1_19 = arith.constant 1 : index
    %c0_20 = arith.constant 0 : index
    %47 = vector.load %arg3[%c1_19, %c0_20] : memref<8x128xf32, #tpu.memory_space<vmem>>, vector<1x128xf32>
    %cst_21 = arith.constant dense<0.000000e+00> : vector<1x16xf32>
    %48 = tpu.matmul %47, %46, %cst_21 {dimension_numbers = #tpu.dot_dimension_numbers<[1], [1], [0], [0], [0, 0, 1, 0], [], []>} : vector<1x128xf32>, vector<16x128xf32>, vector<1x16xf32> -> vector<1x16xf32>
    %49 = vector.broadcast %44 : vector<16x1xf32> to vector<16x16xf32>
    %50 = vector.broadcast %48 : vector<1x16xf32> to vector<16x16xf32>
    %51 = arith.addf %49, %50 : vector<16x16xf32>
    %52 = arith.negf %51 : vector<16x16xf32>
    %53 = math.exp %52 : vector<16x16xf32>
    %cst_22 = arith.constant 1.000000e+00 : f32
    %54 = vector.broadcast %cst_22 : f32 to vector<16x16xf32>
    %55 = arith.addf %54, %53 : vector<16x16xf32>
    %56 = arith.divf %54, %55 : vector<16x16xf32>
    %57 = arith.addf %56, %0 : vector<16x16xf32>
    %58 = math.exp %57 : vector<16x16xf32>
    %cst_23 = arith.constant dense<0.000000e+00> : vector<16xf32>
    %59 = vector.multi_reduction <add>, %58, %cst_23 [1] : vector<16x16xf32> to vector<16xf32>
    %60 = vector.shape_cast %59 : vector<16xf32> to vector<16x1xf32>
    %cst_24 = arith.constant 1.000000e-16 : f32
    %61 = vector.broadcast %cst_24 : f32 to vector<16x1xf32>
    %62 = arith.addf %60, %61 : vector<16x1xf32>
    %cst_25 = arith.constant dense<0.000000e+00> : vector<16x128xf32>
    %63 = tpu.matmul %58, %46, %cst_25 {dimension_numbers = #tpu.dot_dimension_numbers<[1], [0], [0], [1], [0, 0, 1, 1], [], []>} : vector<16x16xf32>, vector<16x128xf32>, vector<16x128xf32> -> vector<16x128xf32>
    %64 = tpu.reciprocal %62 {approx = true} : vector<16x1xf32> -> vector<16x1xf32>
    %65 = vector.broadcast %64 : vector<16x1xf32> to vector<16x128xf32>
    %66 = arith.mulf %63, %65 : vector<16x128xf32>
    %cst_26 = arith.constant 0.000000e+00 : f32
    %67 = vector.broadcast %cst_26 : f32 to vector<16x128xf32>
    %68 = arith.cmpf ogt, %66, %67 : vector<16x128xf32>
    %cst_27 = arith.constant 0.000000e+00 : f32
    %69 = vector.broadcast %cst_27 : f32 to vector<16x128xf32>
    %70 = arith.minimumf %66, %69 : vector<16x128xf32>
    %71 = math.exp %70 : vector<16x128xf32>
    %cst_28 = arith.constant 1.000000e+00 : f32
    %72 = vector.broadcast %cst_28 : f32 to vector<16x128xf32>
    %73 = arith.subf %71, %72 : vector<16x128xf32>
    %74 = arith.select %68, %66, %73 : vector<16x128xi1>, vector<16x128xf32>
    %c2 = arith.constant 2 : index
    %c0_29 = arith.constant 0 : index
    %c0_30 = arith.constant 0 : index
    %75 = vector.load %arg2[%c2, %c0_29, %c0_30] : memref<4x128x128xf32, #tpu.memory_space<vmem>>, vector<1x128x128xf32>
    %76 = vector.shape_cast %75 : vector<1x128x128xf32> to vector<128x128xf32>
    %cst_31 = arith.constant dense<0.000000e+00> : vector<16x128xf32>
    %77 = tpu.matmul %74, %76, %cst_31 {dimension_numbers = #tpu.dot_dimension_numbers<[1], [0], [0], [1], [0, 0, 1, 1], [], []>} : vector<16x128xf32>, vector<128x128xf32>, vector<16x128xf32> -> vector<16x128xf32>
    %78 = vector.extract_strided_slice %77 {offsets = [0, 127], sizes = [16, 1], strides = [1, 1]} : vector<16x128xf32> to vector<16x1xf32>
    %79 = vector.broadcast %6 : vector<1x128xf32> to vector<16x128xf32>
    %80 = arith.mulf %77, %79 : vector<16x128xf32>
    %c2_32 = arith.constant 2 : index
    %c0_33 = arith.constant 0 : index
    %81 = vector.load %arg3[%c2_32, %c0_33] : memref<8x128xf32, #tpu.memory_space<vmem>>, vector<1x128xf32>
    %cst_34 = arith.constant dense<0.000000e+00> : vector<1x16xf32>
    %82 = tpu.matmul %81, %80, %cst_34 {dimension_numbers = #tpu.dot_dimension_numbers<[1], [1], [0], [0], [0, 0, 1, 0], [], []>} : vector<1x128xf32>, vector<16x128xf32>, vector<1x16xf32> -> vector<1x16xf32>
    %83 = vector.broadcast %78 : vector<16x1xf32> to vector<16x16xf32>
    %84 = vector.broadcast %82 : vector<1x16xf32> to vector<16x16xf32>
    %85 = arith.addf %83, %84 : vector<16x16xf32>
    %86 = arith.negf %85 : vector<16x16xf32>
    %87 = math.exp %86 : vector<16x16xf32>
    %cst_35 = arith.constant 1.000000e+00 : f32
    %88 = vector.broadcast %cst_35 : f32 to vector<16x16xf32>
    %89 = arith.addf %88, %87 : vector<16x16xf32>
    %90 = arith.divf %88, %89 : vector<16x16xf32>
    %91 = arith.addf %90, %0 : vector<16x16xf32>
    %92 = math.exp %91 : vector<16x16xf32>
    %cst_36 = arith.constant dense<0.000000e+00> : vector<16xf32>
    %93 = vector.multi_reduction <add>, %92, %cst_36 [1] : vector<16x16xf32> to vector<16xf32>
    %94 = vector.shape_cast %93 : vector<16xf32> to vector<16x1xf32>
    %cst_37 = arith.constant 1.000000e-16 : f32
    %95 = vector.broadcast %cst_37 : f32 to vector<16x1xf32>
    %96 = arith.addf %94, %95 : vector<16x1xf32>
    %cst_38 = arith.constant dense<0.000000e+00> : vector<16x128xf32>
    %97 = tpu.matmul %92, %80, %cst_38 {dimension_numbers = #tpu.dot_dimension_numbers<[1], [0], [0], [1], [0, 0, 1, 1], [], []>} : vector<16x16xf32>, vector<16x128xf32>, vector<16x128xf32> -> vector<16x128xf32>
    %98 = vector.broadcast %96 : vector<16x1xf32> to vector<16x128xf32>
    %99 = arith.divf %97, %98 : vector<16x128xf32>
    %c0_39 = arith.constant 0 : index
    %c0_40 = arith.constant 0 : index
    %c0_41 = arith.constant 0 : index
    %100 = vector.load %arg4[%c0_39, %c0_40, %c0_41] : memref<3x16x128xf32, #tpu.memory_space<vmem>>, vector<1x16x128xf32>
    %101 = vector.shape_cast %100 : vector<1x16x128xf32> to vector<16x128xf32>
    %102 = vector.shape_cast %99 : vector<16x128xf32> to vector<1x16x128xf32>
    tpu.vector_store %arg4[%c0_39, %c0_40, %c0_41], %102 {strides = array<i32>} : memref<3x16x128xf32, #tpu.memory_space<vmem>>, vector<1x16x128xf32>,
    %c2_42 = arith.constant 2 : index
    %c0_43 = arith.constant 0 : index
    %c0_44 = arith.constant 0 : index
    %103 = vector.load %arg2[%c2_42, %c0_43, %c0_44] : memref<4x128x128xf32, #tpu.memory_space<vmem>>, vector<1x128x128xf32>
    %104 = vector.shape_cast %103 : vector<1x128x128xf32> to vector<128x128xf32>
    %cst_45 = arith.constant dense<0.000000e+00> : vector<16x128xf32>
    %105 = tpu.matmul %99, %104, %cst_45 {dimension_numbers = #tpu.dot_dimension_numbers<[1], [1], [0], [0], [0, 0, 1, 0], [], []>} : vector<16x128xf32>, vector<128x128xf32>, vector<16x128xf32> -> vector<16x128xf32>
    %106 = vector.broadcast %10 : vector<16x1xf32> to vector<16x16xf32>
    %107 = vector.broadcast %14 : vector<1x16xf32> to vector<16x16xf32>
    %108 = arith.addf %106, %107 : vector<16x16xf32>
    %109 = arith.negf %108 : vector<16x16xf32>
    %110 = math.exp %109 : vector<16x16xf32>
    %cst_46 = arith.constant 1.000000e+00 : f32
    %111 = vector.broadcast %cst_46 : f32 to vector<16x16xf32>
    %112 = arith.addf %111, %110 : vector<16x16xf32>
    %113 = arith.divf %111, %112 : vector<16x16xf32>
    %114 = arith.addf %113, %0 : vector<16x16xf32>
    %115 = math.exp %114 : vector<16x16xf32>
    %cst_47 = arith.constant dense<0.000000e+00> : vector<16xf32>
    %116 = vector.multi_reduction <add>, %115, %cst_47 [1] : vector<16x16xf32> to vector<16xf32>
    %117 = vector.shape_cast %116 : vector<16xf32> to vector<16x1xf32>
    %cst_48 = arith.constant 1.000000e-16 : f32
    %118 = vector.broadcast %cst_48 : f32 to vector<16x1xf32>
    %119 = arith.addf %117, %118 : vector<16x1xf32>
    %cst_49 = arith.constant dense<0.000000e+00> : vector<16x128xf32>
    %120 = tpu.matmul %115, %105, %cst_49 {dimension_numbers = #tpu.dot_dimension_numbers<[1], [0], [0], [1], [0, 0, 1, 1], [], []>} : vector<16x16xf32>, vector<16x128xf32>, vector<16x128xf32> -> vector<16x128xf32>
    %121 = tpu.reciprocal %119 {approx = true} : vector<16x1xf32> -> vector<16x1xf32>
    %122 = vector.broadcast %121 : vector<16x1xf32> to vector<16x128xf32>
    %123 = arith.mulf %120, %122 : vector<16x128xf32>
    %cst_50 = arith.constant 0.000000e+00 : f32
    %124 = vector.broadcast %cst_50 : f32 to vector<16x128xf32>
    %125 = arith.cmpf ogt, %123, %124 : vector<16x128xf32>
    %cst_51 = arith.constant 0.000000e+00 : f32
    %126 = vector.broadcast %cst_51 : f32 to vector<16x128xf32>
    %127 = arith.minimumf %123, %126 : vector<16x128xf32>
    %128 = math.exp %127 : vector<16x128xf32>
    %cst_52 = arith.constant 1.000000e+00 : f32
    %129 = vector.broadcast %cst_52 : f32 to vector<16x128xf32>
    %130 = arith.subf %128, %129 : vector<16x128xf32>
    %131 = arith.select %125, %123, %130 : vector<16x128xi1>, vector<16x128xf32>
    %c3 = arith.constant 3 : index
    %c0_53 = arith.constant 0 : index
    %c0_54 = arith.constant 0 : index
    %132 = vector.load %arg2[%c3, %c0_53, %c0_54] : memref<4x128x128xf32, #tpu.memory_space<vmem>>, vector<1x128x128xf32>
    %133 = vector.shape_cast %132 : vector<1x128x128xf32> to vector<128x128xf32>
    %cst_55 = arith.constant dense<0.000000e+00> : vector<16x128xf32>
    %134 = tpu.matmul %99, %133, %cst_55 {dimension_numbers = #tpu.dot_dimension_numbers<[1], [0], [0], [1], [0, 0, 1, 1], [], []>} : vector<16x128xf32>, vector<128x128xf32>, vector<16x128xf32> -> vector<16x128xf32>
    %c2_56 = arith.constant 2 : index
    %c0_57 = arith.constant 0 : index
    %c0_58 = arith.constant 0 : index
    %135 = vector.load %arg4[%c2_56, %c0_57, %c0_58] : memref<3x16x128xf32, #tpu.memory_space<vmem>>, vector<1x16x128xf32>
    %136 = vector.shape_cast %135 : vector<1x16x128xf32> to vector<16x128xf32>
    %137 = vector.shape_cast %134 : vector<16x128xf32> to vector<1x16x128xf32>
    tpu.vector_store %arg4[%c2_56, %c0_57, %c0_58], %137 {strides = array<i32>} : memref<3x16x128xf32, #tpu.memory_space<vmem>>, vector<1x16x128xf32>,
    %c0_59 = arith.constant 0 : index
    %c0_60 = arith.constant 0 : index
    %c0_61 = arith.constant 0 : index
    %138 = vector.load %arg2[%c0_59, %c0_60, %c0_61] : memref<4x128x128xf32, #tpu.memory_space<vmem>>, vector<1x128x128xf32>
    %139 = vector.shape_cast %138 : vector<1x128x128xf32> to vector<128x128xf32>
    %cst_62 = arith.constant dense<0.000000e+00> : vector<16x128xf32>
    %140 = tpu.matmul %131, %139, %cst_62 {dimension_numbers = #tpu.dot_dimension_numbers<[1], [1], [0], [0], [0, 0, 1, 0], [], []>} : vector<16x128xf32>, vector<128x128xf32>, vector<16x128xf32> -> vector<16x128xf32>
    %c1_63 = arith.constant 1 : index
    %c0_64 = arith.constant 0 : index
    %c0_65 = arith.constant 0 : index
    %141 = vector.load %arg4[%c1_63, %c0_64, %c0_65] : memref<3x16x128xf32, #tpu.memory_space<vmem>>, vector<1x16x128xf32>
    %142 = vector.shape_cast %141 : vector<1x16x128xf32> to vector<16x128xf32>
    %143 = vector.shape_cast %140 : vector<16x128xf32> to vector<1x16x128xf32>
    tpu.vector_store %arg4[%c1_63, %c0_64, %c0_65], %143 {strides = array<i32>} : memref<3x16x128xf32, #tpu.memory_space<vmem>>, vector<1x16x128xf32>,
    return
  }
}

</mosaic_0001>

<llo_original>
// kernel: tpu_custom_call.1
$region0: #{tpu_custom_call.1}
  #allocation0 [shape = 'u32[]', space=smem, size = 0x4, offset = 0x4, fixed_abs, tag = 'smem constant byte address 0x4 - core index']
  #allocation1 [shape = 'u32[144,128]{1,0:T(1,128)}', space=vmem, size = 0x12000, scoped, tag = 'internal scratch']
  %s0 = inlined_call_operand.hbm [shape: f32[16,128], index: 0, kind: input, shape index: {}]
  %s1 = inlined_call_operand.hbm [shape: f32[16,16], index: 1, kind: input, shape index: {}]
  %s2 = inlined_call_operand.hbm [shape: f32[4,128,128], index: 2, kind: input, shape index: {}]
  %s3 = inlined_call_operand.vmem [shape: f32[8,128], index: 3, kind: input, shape index: {}]
  %s4 = inlined_call_operand.hbm [shape: f32[3,16,128], index: 4, kind: output, shape index: {}]
  %s5 = sld [smem:[#allocation0]]
  $region38: #{tpu_custom_call.1} parent=0
    _
  %s7 = ssub.s32 1, %s5
  %s8 = scalar_select 0, %s7, %s5
  $region1: #{tpu_custom_call.1} parent=0
    #allocation2 [shape = 'u8[8192]{0}', space=vmem, size = 0x2000, scoped, tag = 'input window, operand 0, single buffered']
    #allocation3 [shape = 's32[1]{0}', space=sflag, size = 0x4, scoped, tag = 'scoped memory for tpu_custom_call.1']
    #allocation4 [shape = 's32[1]{0}', space=sflag, size = 0x4, scoped, tag = 'scoped memory for tpu_custom_call.1']
    #allocation5 [shape = 'u8[8192]{0}', space=vmem, size = 0x2000, scoped, tag = 'input window, operand 1, single buffered']
    #allocation6 [shape = 's32[1]{0}', space=sflag, size = 0x4, scoped, tag = 'scoped memory for tpu_custom_call.1']
    #allocation7 [shape = 'u8[262144]{0}', space=vmem, size = 0x40000, scoped, tag = 'input window, operand 2, single buffered']
    #allocation8 [shape = 'u8[24576]{0}', space=vmem, size = 0x6000, scoped, tag = 'output window, operand 0, single buffered']
    %9 = vsyncpa [#allocation3], 0
    %10 = vsyncpa [#allocation6], 0
    %11 = vsyncpa [#allocation4], 0
    // Predicated region
    $region2: #{tpu_custom_call.1} parent=1 // pred_check
      _
    $region3: #{tpu_custom_call.1} parent=1 // pred_check_branch
      %13 = sbr.rel (0) target = $region5
    $region4: #{tpu_custom_call.1} parent=1 // pred_region
      %s15 = ssub.s32 256, 256
      %16 = vsyncadd [#allocation3], %s15
      %s17 = sshll.u32 [#allocation2], 4
      %s18 = int_to_ptr.vmem [resolvable:$true] %s17
      %23 = dma.hbm_to_vmem [thread:$0]  %s0, 256, %s18, [#allocation3], 128, 128, 8
    $region5: #{tpu_custom_call.1} parent=1 // pred_fallthru
      _
    // Predicated region
    $region6: #{tpu_custom_call.1} parent=1 // pred_check
      _
    $region7: #{tpu_custom_call.1} parent=1 // pred_check_branch
      %25 = sbr.rel (0) target = $region9
    $region8: #{tpu_custom_call.1} parent=1 // pred_region
      %s27 = ssub.s32 256, 256
      %28 = vsyncadd [#allocation6], %s27
      %s29 = sshll.u32 [#allocation5], 4
      %s30 = int_to_ptr.vmem [resolvable:$true] %s29
      %35 = dma.hbm_to_vmem [thread:$0]  %s1, 256, %s30, [#allocation6], 128, 128, 8
    $region9: #{tpu_custom_call.1} parent=1 // pred_fallthru
      _
    // Predicated region
    $region10: #{tpu_custom_call.1} parent=1 // pred_check
      _
    $region11: #{tpu_custom_call.1} parent=1 // pred_check_branch
      %37 = sbr.rel (0) target = $region13
    $region12: #{tpu_custom_call.1} parent=1 // pred_region
      %s39 = ssub.s32 8192, 8192
      %40 = vsyncadd [#allocation6], %s39
      %s41 = sshll.u32 [#allocation7], 4
      %s42 = int_to_ptr.vmem [resolvable:$true] %s41
      %47 = dma.hbm_to_vmem [thread:$0]  %s2, 8192, %s42, [#allocation6], 128, 128, 8
    $region13: #{tpu_custom_call.1} parent=1 // pred_fallthru
      _
    // Predicated region
    $region14: #{tpu_custom_call.1} parent=1 // pred_check
      _
    $region15: #{tpu_custom_call.1} parent=1 // pred_check_branch
      %49 = sbr.rel (0) target = $region17
    $region16: #{tpu_custom_call.1} parent=1 // pred_region
      _
    $region17: #{tpu_custom_call.1} parent=1 // pred_fallthru
      _
    // Predicated region
    $region18: #{tpu_custom_call.1} parent=1 // pred_check
      _
    $region19: #{tpu_custom_call.1} parent=1 // pred_check_branch
      %51 = sbr.rel (0) target = $region21
    $region20: #{tpu_custom_call.1} parent=1 // pred_region
      %52 = dma.done [#allocation3], 256
    $region21: #{tpu_custom_call.1} parent=1 // pred_fallthru
      _
    // Predicated region
    $region22: #{tpu_custom_call.1} parent=1 // pred_check
      _
    $region23: #{tpu_custom_call.1} parent=1 // pred_check_branch
      %54 = sbr.rel (0) target = $region25
    $region24: #{tpu_custom_call.1} parent=1 // pred_region
      %55 = dma.done [#allocation6], 256
    $region25: #{tpu_custom_call.1} parent=1 // pred_fallthru
      _
    // Predicated region
    $region26: #{tpu_custom_call.1} parent=1 // pred_check
      _
    $region27: #{tpu_custom_call.1} parent=1 // pred_check_branch
      %57 = sbr.rel (0) target = $region29
    $region28: #{tpu_custom_call.1} parent=1 // pred_region
      %58 = dma.done [#allocation6], 8192
    $region29: #{tpu_custom_call.1} parent=1 // pred_fallthru
      _
    %v59 = vld [vmem:[#allocation5] sm:$0xff]
    %v60 = vld [vmem:[#allocation5 + $0x8] sm:$0xff]
    %v61 = vld [vmem:[#allocation2] sm:$0xff]
    %v62 = vld [vmem:[#allocation2 + $0x8] sm:$0xff]
    %v63 = vlaneseq
    %v64 = vand.u32 %v63, 127
    %vm65 = vcmp.lt.s32.totalorder %v64, 127
    %v66 = vsel %vm65, 1, 0
    %v67 = vcvt.s32.f32 %v66
    %v68 = vld [vmem:[#allocation7] sm:$0xff]
    %v69 = vld [vmem:[#allocation7 + $0x8] sm:$0xff]
    %v70 = vld [vmem:[#allocation7 + $0x10] sm:$0xff]
    %v71 = vld [vmem:[#allocation7 + $0x18] sm:$0xff]
    %v72 = vld [vmem:[#allocation7 + $0x20] sm:$0xff]
    %v73 = vld [vmem:[#allocation7 + $0x28] sm:$0xff]
    %v74 = vld [vmem:[#allocation7 + $0x30] sm:$0xff]
    %v75 = vld [vmem:[#allocation7 + $0x38] sm:$0xff]
    %v76 = vld [vmem:[#allocation7 + $0x40] sm:$0xff]
    %v77 = vld [vmem:[#allocation7 + $0x48] sm:$0xff]
    %v78 = vld [vmem:[#allocation7 + $0x50] sm:$0xff]
    %v79 = vld [vmem:[#allocation7 + $0x58] sm:$0xff]
    %v80 = vld [vmem:[#allocation7 + $0x60] sm:$0xff]
    %v81 = vld [vmem:[#allocation7 + $0x68] sm:$0xff]
    %v82 = vld [vmem:[#allocation7 + $0x70] sm:$0xff]
    %v83 = vld [vmem:[#allocation7 + $0x78] sm:$0xff]
    %84 = vmatprep.subr.mxu0 0.0
    %85 = vmatpush1.msra.mxu0 %v68
    %86 = vmatprep.subr.mxu0 0.0
    %87 = vmatpush1.msra.mxu0 %v69
    %88 = vmatprep.subr.mxu0 0.0
    %89 = vmatpush1.msra.mxu0 %v70
    %90 = vmatprep.subr.mxu0 0.0
    %91 = vmatpush1.msra.mxu0 %v71
    %92 = vmatprep.subr.mxu0 0.0
    %93 = vmatpush1.msra.mxu0 %v72
    %94 = vmatprep.subr.mxu0 0.0
    %95 = vmatpush1.msra.mxu0 %v73
    %96 = vmatprep.subr.mxu0 0.0
    %97 = vmatpush1.msra.mxu0 %v74
    %98 = vmatprep.subr.mxu0 0.0
    %99 = vmatpush1.msra.mxu0 %v75
    %100 = vmatprep.subr.mxu0 0.0
    %101 = vmatpush1.msra.mxu0 %v76
    %102 = vmatprep.subr.mxu0 0.0
    %103 = vmatpush1.msra.mxu0 %v77
    %104 = vmatprep.subr.mxu0 0.0
    %105 = vmatpush1.msra.mxu0 %v78
    %106 = vmatprep.subr.mxu0 0.0
    %107 = vmatpush1.msra.mxu0 %v79
    %108 = vmatprep.subr.mxu0 0.0
    %109 = vmatpush1.msra.mxu0 %v80
    %110 = vmatprep.subr.mxu0 0.0
    %111 = vmatpush1.msra.mxu0 %v81
    %112 = vmatprep.subr.mxu0 0.0
    %113 = vmatpush1.msra.mxu0 %v82
    %114 = vmatprep.subr.mxu0 0.0
    %115 = vmatpush1.msra.mxu0 %v83
    %116 = vmatprep.subr.mxu0 0.0
    %117 = vmatpush1.msra.mxu0 0.0
    %118 = vmatprep.subr.mxu0 0.0
    %119 = vmatpush1.msra.mxu0 0.0
    %120 = vmatprep.subr.mxu0 0.0
    %121 = vmatpush1.msra.mxu0 0.0
    %122 = vmatprep.subr.mxu0 0.0
    %123 = vmatpush1.msra.mxu0 0.0
    %124 = vmatprep.subr.mxu0 0.0
    %125 = vmatpush1.msra.mxu0 0.0
    %126 = vmatprep.subr.mxu0 0.0
    %127 = vmatpush1.msra.mxu0 0.0
    %128 = vmatprep.subr.mxu0 0.0
    %129 = vmatpush1.msra.mxu0 0.0
    %130 = vmatprep.subr.mxu0 0.0
    %131 = vmatpush1.msra.mxu0 0.0
    %132 = vmatprep.subr.mxu0 0.0
    %133 = vmatpush1.msra.mxu0 0.0
    %134 = vmatprep.subr.mxu0 0.0
    %135 = vmatpush1.msra.mxu0 0.0
    %136 = vmatprep.subr.mxu0 0.0
    %137 = vmatpush1.msra.mxu0 0.0
    %138 = vmatprep.subr.mxu0 0.0
    %139 = vmatpush1.msra.mxu0 0.0
    %140 = vmatprep.subr.mxu0 0.0
    %141 = vmatpush1.msra.mxu0 0.0
    %142 = vmatprep.subr.mxu0 0.0
    %143 = vmatpush1.msra.mxu0 0.0
    %144 = vmatprep.subr.mxu0 0.0
    %145 = vmatpush1.msra.mxu0 0.0
    %146 = vmatprep.subr.mxu0 0.0
    %147 = vmatpush1.msra.mxu0 0.0
    %148 = vmatprep.mubr.f32.mxu0 0.0
    %149 = vmatmul.mubr.f32.gmra.mrb[0].mxu0 %v61
    %v150 = vpop.f32.mrb[0].mxu0
    %v151 = vadd.f32 0.0, %v150
    %v152 = vpop.f32.mrb[0].mxu0
    %153 = vmatprep.mubr.f32.mxu0 0.0
    %154 = vmatmul.mubr.f32.gmra.mrb[0].mxu0 %v62
    %v155 = vpop.f32.mrb[0].mxu0
    %v156 = vadd.f32 0.0, %v155
    %v157 = vpop.f32.mrb[0].mxu0
    %158 = vdwg.mxu0
    %v159 = vmul.f32 %v151, %v67
    %v160 = vmul.f32 %v156, %v67
    %v161 = vld [vmem:[%s3] sm:$0x1]
    %162 = vmatprep.subr.mxu0 0.0
    %163 = vmatpush1.xpose.msra.mxu0 %v159
    %164 = vmatprep.subr.mxu0 0.0
    %165 = vmatpush1.xpose.msra.mxu0 %v160
    %166 = vmatprep.subr.mxu0 0.0
    %167 = vmatpush1.xpose.msra.mxu0 0.0
    %168 = vmatprep.subr.mxu0 0.0
    %169 = vmatpush1.xpose.msra.mxu0 0.0
    %170 = vmatprep.subr.mxu0 0.0
    %171 = vmatpush1.xpose.msra.mxu0 0.0
    %172 = vmatprep.subr.mxu0 0.0
    %173 = vmatpush1.xpose.msra.mxu0 0.0
    %174 = vmatprep.subr.mxu0 0.0
    %175 = vmatpush1.xpose.msra.mxu0 0.0
    %176 = vmatprep.subr.mxu0 0.0
    %177 = vmatpush1.xpose.msra.mxu0 0.0
    %178 = vmatprep.subr.mxu0 0.0
    %179 = vmatpush1.xpose.msra.mxu0 0.0
    %180 = vmatprep.subr.mxu0 0.0
    %181 = vmatpush1.xpose.msra.mxu0 0.0
    %182 = vmatprep.subr.mxu0 0.0
    %183 = vmatpush1.xpose.msra.mxu0 0.0
    %184 = vmatprep.subr.mxu0 0.0
    %185 = vmatpush1.xpose.msra.mxu0 0.0
    %186 = vmatprep.subr.mxu0 0.0
    %187 = vmatpush1.xpose.msra.mxu0 0.0
    %188 = vmatprep.subr.mxu0 0.0
    %189 = vmatpush1.xpose.msra.mxu0 0.0
    %190 = vmatprep.subr.mxu0 0.0
    %191 = vmatpush1.xpose.msra.mxu0 0.0
    %192 = vmatprep.subr.mxu0 0.0
    %193 = vmatpush1.xpose.msra.mxu0 0.0
    %194 = vmatprep.subr.mxu0 0.0
    %195 = vmatpush1.xpose.msra.mxu0 0.0
    %196 = vmatprep.subr.mxu0 0.0
    %197 = vmatpush1.xpose.msra.mxu0 0.0
    %198 = vmatprep.subr.mxu0 0.0
    %199 = vmatpush1.xpose.msra.mxu0 0.0
    %200 = vmatprep.subr.mxu0 0.0
    %201 = vmatpush1.xpose.msra.mxu0 0.0
    %202 = vmatprep.subr.mxu0 0.0
    %203 = vmatpush1.xpose.msra.mxu0 0.0
    %204 = vmatprep.subr.mxu0 0.0
    %205 = vmatpush1.xpose.msra.mxu0 0.0
    %206 = vmatprep.subr.mxu0 0.0
    %207 = vmatpush1.xpose.msra.mxu0 0.0
    %208 = vmatprep.subr.mxu0 0.0
    %209 = vmatpush1.xpose.msra.mxu0 0.0
    %210 = vmatprep.subr.mxu0 0.0
    %211 = vmatpush1.xpose.msra.mxu0 0.0
    %212 = vmatprep.subr.mxu0 0.0
    %213 = vmatpush1.xpose.msra.mxu0 0.0
    %214 = vmatprep.subr.mxu0 0.0
    %215 = vmatpush1.xpose.msra.mxu0 0.0
    %216 = vmatprep.subr.mxu0 0.0
    %217 = vmatpush1.xpose.msra.mxu0 0.0
    %218 = vmatprep.subr.mxu0 0.0
    %219 = vmatpush1.xpose.msra.mxu0 0.0
    %220 = vmatprep.subr.mxu0 0.0
    %221 = vmatpush1.xpose.msra.mxu0 0.0
    %222 = vmatprep.subr.mxu0 0.0
    %223 = vmatpush1.xpose.msra.mxu0 0.0
    %224 = vmatprep.subr.mxu0 0.0
    %225 = vmatpush1.xpose.msra.mxu0 0.0
    %226 = vmatprep.mubr.f32.mxu0 0.0
    %227 = vmatmul.mubr.f32.gmra.mrb[0].mxu0 %v161
    %v228 = vpop.f32.mrb[0].mxu0
    %v229 = vadd.f32 0.0, %v228
    %v230 = vpop.f32.mrb[0].mxu0
    %231 = vdwg.mxu0
    %233 = vset.pattern.permute.xlu0 127
    %234 = vperm.xlu0 %233, %v151
    %v235 = vpop.permute.xlu0 %234
    %238 = vset.pattern.permute.xlu0 127
    %239 = vperm.xlu0 %238, %v156
    %v240 = vpop.permute.xlu0 %239
    %v242 = vlaneseq
    %v243 = vshrl.u32 %v242, 7
    %v244 = vsub.s32 0, %v243
    %v245 = vrot.slane %v229, %v244
    %v246 = vadd.f32 %v235, %v245
    %v247 = vadd.f32 %v240, %v245
    %v248 = vxor.u32 %v246, 2147483648
    %v249 = vxor.u32 %v247, 2147483648
    %v250 = vmul.f32 %v248, 1.442695
    %v251 = vpow.pop %v250
    %v252 = vmul.f32 %v249, 1.442695
    %v253 = vpow.pop %v252
    %v254 = vadd.f32 %v251, 1.0
    %v255 = vadd.f32 %v253, 1.0
    %v256 = vrcp.pop %v254
    %v257 = vmul.f32 1.0, %v256
    %v258 = vrcp.pop %v255
    %v259 = vmul.f32 1.0, %v258
    %v260 = vadd.f32 %v257, %v59
    %v261 = vadd.f32 %v259, %v60
    %v262 = vmul.f32 %v260, 1.442695
    %v263 = vpow.pop %v262
    %v264 = vmul.f32 %v261, 1.442695
    %v265 = vpow.pop %v264
    %vm266 = vcmask 130048
    %v267 = vsel %vm266, %v263, 0.0
    %268 = vadd.xlane.f32.xlu0 %v267
    %v269 = vpop.xlane.xlu0 %268
    %v270 = vsel %vm266, %v265, 0.0
    %271 = vadd.xlane.f32.xlu0 %v270
    %v272 = vpop.xlane.xlu0 %271
    %v273 = vadd.f32 %v269, 1e-16
    %v274 = vadd.f32 %v272, 1e-16
    %v276 = vsel %vm266, %v263, 0
    %v279 = vsel %vm266, %v265, 0
    %281 = vmatprep.subr.mxu0 0.0
    %282 = vmatpush1.msra.mxu0 %v159
    %283 = vmatprep.subr.mxu0 0.0
    %284 = vmatpush1.msra.mxu0 %v160
    %285 = vmatprep.subr.mxu0 0.0
    %286 = vmatpush1.msra.mxu0 0.0
    %287 = vmatprep.subr.mxu0 0.0
    %288 = vmatpush1.msra.mxu0 0.0
    %289 = vmatprep.subr.mxu0 0.0
    %290 = vmatpush1.msra.mxu0 0.0
    %291 = vmatprep.subr.mxu0 0.0
    %292 = vmatpush1.msra.mxu0 0.0
    %293 = vmatprep.subr.mxu0 0.0
    %294 = vmatpush1.msra.mxu0 0.0
    %295 = vmatprep.subr.mxu0 0.0
    %296 = vmatpush1.msra.mxu0 0.0
    %297 = vmatprep.subr.mxu0 0.0
    %298 = vmatpush1.msra.mxu0 0.0
    %299 = vmatprep.subr.mxu0 0.0
    %300 = vmatpush1.msra.mxu0 0.0
    %301 = vmatprep.subr.mxu0 0.0
    %302 = vmatpush1.msra.mxu0 0.0
    %303 = vmatprep.subr.mxu0 0.0
    %304 = vmatpush1.msra.mxu0 0.0
    %305 = vmatprep.subr.mxu0 0.0
    %306 = vmatpush1.msra.mxu0 0.0
    %307 = vmatprep.subr.mxu0 0.0
    %308 = vmatpush1.msra.mxu0 0.0
    %309 = vmatprep.subr.mxu0 0.0
    %310 = vmatpush1.msra.mxu0 0.0
    %311 = vmatprep.subr.mxu0 0.0
    %312 = vmatpush1.msra.mxu0 0.0
    %313 = vmatprep.subr.mxu0 0.0
    %314 = vmatpush1.msra.mxu0 0.0
    %315 = vmatprep.subr.mxu0 0.0
    %316 = vmatpush1.msra.mxu0 0.0
    %317 = vmatprep.subr.mxu0 0.0
    %318 = vmatpush1.msra.mxu0 0.0
    %319 = vmatprep.subr.mxu0 0.0
    %320 = vmatpush1.msra.mxu0 0.0
    %321 = vmatprep.subr.mxu0 0.0
    %322 = vmatpush1.msra.mxu0 0.0
    %323 = vmatprep.subr.mxu0 0.0
    %324 = vmatpush1.msra.mxu0 0.0
    %325 = vmatprep.subr.mxu0 0.0
    %326 = vmatpush1.msra.mxu0 0.0
    %327 = vmatprep.subr.mxu0 0.0
    %328 = vmatpush1.msra.mxu0 0.0
    %329 = vmatprep.subr.mxu0 0.0
    %330 = vmatpush1.msra.mxu0 0.0
    %331 = vmatprep.subr.mxu0 0.0
    %332 = vmatpush1.msra.mxu0 0.0
    %333 = vmatprep.subr.mxu0 0.0
    %334 = vmatpush1.msra.mxu0 0.0
    %335 = vmatprep.subr.mxu0 0.0
    %336 = vmatpush1.msra.mxu0 0.0
    %337 = vmatprep.subr.mxu0 0.0
    %338 = vmatpush1.msra.mxu0 0.0
    %339 = vmatprep.subr.mxu0 0.0
    %340 = vmatpush1.msra.mxu0 0.0
    %341 = vmatprep.subr.mxu0 0.0
    %342 = vmatpush1.msra.mxu0 0.0
    %343 = vmatprep.subr.mxu0 0.0
    %344 = vmatpush1.msra.mxu0 0.0
    %345 = vmatprep.mubr.f32.mxu0 0.0
    %346 = vmatmul.mubr.f32.gmra.mrb[0].mxu0 %v276
    %v347 = vpop.f32.mrb[0].mxu0
    %v348 = vadd.f32 0.0, %v347
    %v349 = vpop.f32.mrb[0].mxu0
    %350 = vmatprep.mubr.f32.mxu0 0.0
    %351 = vmatmul.mubr.f32.gmra.mrb[0].mxu0 %v279
    %v352 = vpop.f32.mrb[0].mxu0
    %v353 = vadd.f32 0.0, %v352
    %v354 = vpop.f32.mrb[0].mxu0
    %355 = vdwg.mxu0
    %v356 = vrcp.pop %v273
    %v357 = vrcp.pop %v274
    %v358 = vmul.f32 %v348, %v356
    %v359 = vmul.f32 %v353, %v357
    %vm360 = vcmp.gt.f32.partialorder %v358, 0.0
    %vm361 = vcmp.gt.f32.partialorder %v359, 0.0
    %v362 = vmin.f32 %v358, 0.0
    %v363 = vmin.f32 %v359, 0.0
    %v364 = vmul.f32 %v362, 1.442695
    %v365 = vpow.pop %v364
    %v366 = vmul.f32 %v363, 1.442695
    %v367 = vpow.pop %v366
    %v368 = vsub.f32 %v365, 1.0
    %v369 = vsub.f32 %v367, 1.0
    %v370 = vsel %vm360, %v358, %v368
    %v371 = vsel %vm361, %v359, %v369
    %s372 = scalar_lea.vmem [#allocation7], 128
    %v373 = vld [vmem:[%s372] sm:$0xff]
    %v374 = vld [vmem:[%s372 + $0x8] sm:$0xff]
    %v375 = vld [vmem:[%s372 + $0x10] sm:$0xff]
    %v376 = vld [vmem:[%s372 + $0x18] sm:$0xff]
    %v377 = vld [vmem:[%s372 + $0x20] sm:$0xff]
    %v378 = vld [vmem:[%s372 + $0x28] sm:$0xff]
    %v379 = vld [vmem:[%s372 + $0x30] sm:$0xff]
    %v380 = vld [vmem:[%s372 + $0x38] sm:$0xff]
    %v381 = vld [vmem:[%s372 + $0x40] sm:$0xff]
    %v382 = vld [vmem:[%s372 + $0x48] sm:$0xff]
    %v383 = vld [vmem:[%s372 + $0x50] sm:$0xff]
    %v384 = vld [vmem:[%s372 + $0x58] sm:$0xff]
    %v385 = vld [vmem:[%s372 + $0x60] sm:$0xff]
    %v386 = vld [vmem:[%s372 + $0x68] sm:$0xff]
    %v387 = vld [vmem:[%s372 + $0x70] sm:$0xff]
    %v388 = vld [vmem:[%s372 + $0x78] sm:$0xff]
    %389 = vmatprep.subr.mxu0 0.0
    %390 = vmatpush1.msra.mxu0 %v373
    %391 = vmatprep.subr.mxu0 0.0
    %392 = vmatpush1.msra.mxu0 %v374
    %393 = vmatprep.subr.mxu0 0.0
    %394 = vmatpush1.msra.mxu0 %v375
    %395 = vmatprep.subr.mxu0 0.0
    %396 = vmatpush1.msra.mxu0 %v376
    %397 = vmatprep.subr.mxu0 0.0
    %398 = vmatpush1.msra.mxu0 %v377
    %399 = vmatprep.subr.mxu0 0.0
    %400 = vmatpush1.msra.mxu0 %v378
    %401 = vmatprep.subr.mxu0 0.0
    %402 = vmatpush1.msra.mxu0 %v379
    %403 = vmatprep.subr.mxu0 0.0
    %404 = vmatpush1.msra.mxu0 %v380
    %405 = vmatprep.subr.mxu0 0.0
    %406 = vmatpush1.msra.mxu0 %v381
    %407 = vmatprep.subr.mxu0 0.0
    %408 = vmatpush1.msra.mxu0 %v382
    %409 = vmatprep.subr.mxu0 0.0
    %410 = vmatpush1.msra.mxu0 %v383
    %411 = vmatprep.subr.mxu0 0.0
    %412 = vmatpush1.msra.mxu0 %v384
    %413 = vmatprep.subr.mxu0 0.0
    %414 = vmatpush1.msra.mxu0 %v385
    %415 = vmatprep.subr.mxu0 0.0
    %416 = vmatpush1.msra.mxu0 %v386
    %417 = vmatprep.subr.mxu0 0.0
    %418 = vmatpush1.msra.mxu0 %v387
    %419 = vmatprep.subr.mxu0 0.0
    %420 = vmatpush1.msra.mxu0 %v388
    %421 = vmatprep.subr.mxu0 0.0
    %422 = vmatpush1.msra.mxu0 0.0
    %423 = vmatprep.subr.mxu0 0.0
    %424 = vmatpush1.msra.mxu0 0.0
    %425 = vmatprep.subr.mxu0 0.0
    %426 = vmatpush1.msra.mxu0 0.0
    %427 = vmatprep.subr.mxu0 0.0
    %428 = vmatpush1.msra.mxu0 0.0
    %429 = vmatprep.subr.mxu0 0.0
    %430 = vmatpush1.msra.mxu0 0.0
    %431 = vmatprep.subr.mxu0 0.0
    %432 = vmatpush1.msra.mxu0 0.0
    %433 = vmatprep.subr.mxu0 0.0
    %434 = vmatpush1.msra.mxu0 0.0
    %435 = vmatprep.subr.mxu0 0.0
    %436 = vmatpush1.msra.mxu0 0.0
    %437 = vmatprep.subr.mxu0 0.0
    %438 = vmatpush1.msra.mxu0 0.0
    %439 = vmatprep.subr.mxu0 0.0
    %440 = vmatpush1.msra.mxu0 0.0
    %441 = vmatprep.subr.mxu0 0.0
    %442 = vmatpush1.msra.mxu0 0.0
    %443 = vmatprep.subr.mxu0 0.0
    %444 = vmatpush1.msra.mxu0 0.0
    %445 = vmatprep.subr.mxu0 0.0
    %446 = vmatpush1.msra.mxu0 0.0
    %447 = vmatprep.subr.mxu0 0.0
    %448 = vmatpush1.msra.mxu0 0.0
    %449 = vmatprep.subr.mxu0 0.0
    %450 = vmatpush1.msra.mxu0 0.0
    %451 = vmatprep.subr.mxu0 0.0
    %452 = vmatpush1.msra.mxu0 0.0
    %453 = vmatprep.mubr.f32.mxu0 0.0
    %454 = vmatmul.mubr.f32.gmra.mrb[0].mxu0 %v370
    %v455 = vpop.f32.mrb[0].mxu0
    %v456 = vadd.f32 0.0, %v455
    %v457 = vpop.f32.mrb[0].mxu0
    %458 = vmatprep.mubr.f32.mxu0 0.0
    %459 = vmatmul.mubr.f32.gmra.mrb[0].mxu0 %v371
    %v460 = vpop.f32.mrb[0].mxu0
    %v461 = vadd.f32 0.0, %v460
    %v462 = vpop.f32.mrb[0].mxu0
    %463 = vdwg.mxu0
    %v464 = vmul.f32 %v456, %v67
    %v465 = vmul.f32 %v461, %v67
    %v466 = vld [vmem:[%s3 + $0x1] sm:$0x1]
    %467 = vmatprep.subr.mxu0 0.0
    %468 = vmatpush1.xpose.msra.mxu0 %v464
    %469 = vmatprep.subr.mxu0 0.0
    %470 = vmatpush1.xpose.msra.mxu0 %v465
    %471 = vmatprep.subr.mxu0 0.0
    %472 = vmatpush1.xpose.msra.mxu0 0.0
    %473 = vmatprep.subr.mxu0 0.0
    %474 = vmatpush1.xpose.msra.mxu0 0.0
    %475 = vmatprep.subr.mxu0 0.0
    %476 = vmatpush1.xpose.msra.mxu0 0.0
    %477 = vmatprep.subr.mxu0 0.0
    %478 = vmatpush1.xpose.msra.mxu0 0.0
    %479 = vmatprep.subr.mxu0 0.0
    %480 = vmatpush1.xpose.msra.mxu0 0.0
    %481 = vmatprep.subr.mxu0 0.0
    %482 = vmatpush1.xpose.msra.mxu0 0.0
    %483 = vmatprep.subr.mxu0 0.0
    %484 = vmatpush1.xpose.msra.mxu0 0.0
    %485 = vmatprep.subr.mxu0 0.0
    %486 = vmatpush1.xpose.msra.mxu0 0.0
    %487 = vmatprep.subr.mxu0 0.0
    %488 = vmatpush1.xpose.msra.mxu0 0.0
    %489 = vmatprep.subr.mxu0 0.0
    %490 = vmatpush1.xpose.msra.mxu0 0.0
    %491 = vmatprep.subr.mxu0 0.0
    %492 = vmatpush1.xpose.msra.mxu0 0.0
    %493 = vmatprep.subr.mxu0 0.0
    %494 = vmatpush1.xpose.msra.mxu0 0.0
    %495 = vmatprep.subr.mxu0 0.0
    %496 = vmatpush1.xpose.msra.mxu0 0.0
    %497 = vmatprep.subr.mxu0 0.0
    %498 = vmatpush1.xpose.msra.mxu0 0.0
    %499 = vmatprep.subr.mxu0 0.0
    %500 = vmatpush1.xpose.msra.mxu0 0.0
    %501 = vmatprep.subr.mxu0 0.0
    %502 = vmatpush1.xpose.msra.mxu0 0.0
    %503 = vmatprep.subr.mxu0 0.0
    %504 = vmatpush1.xpose.msra.mxu0 0.0
    %505 = vmatprep.subr.mxu0 0.0
    %506 = vmatpush1.xpose.msra.mxu0 0.0
    %507 = vmatprep.subr.mxu0 0.0
    %508 = vmatpush1.xpose.msra.mxu0 0.0
    %509 = vmatprep.subr.mxu0 0.0
    %510 = vmatpush1.xpose.msra.mxu0 0.0
    %511 = vmatprep.subr.mxu0 0.0
    %512 = vmatpush1.xpose.msra.mxu0 0.0
    %513 = vmatprep.subr.mxu0 0.0
    %514 = vmatpush1.xpose.msra.mxu0 0.0
    %515 = vmatprep.subr.mxu0 0.0
    %516 = vmatpush1.xpose.msra.mxu0 0.0
    %517 = vmatprep.subr.mxu0 0.0
    %518 = vmatpush1.xpose.msra.mxu0 0.0
    %519 = vmatprep.subr.mxu0 0.0
    %520 = vmatpush1.xpose.msra.mxu0 0.0
    %521 = vmatprep.subr.mxu0 0.0
    %522 = vmatpush1.xpose.msra.mxu0 0.0
    %523 = vmatprep.subr.mxu0 0.0
    %524 = vmatpush1.xpose.msra.mxu0 0.0
    %525 = vmatprep.subr.mxu0 0.0
    %526 = vmatpush1.xpose.msra.mxu0 0.0
    %527 = vmatprep.subr.mxu0 0.0
    %528 = vmatpush1.xpose.msra.mxu0 0.0
    %529 = vmatprep.subr.mxu0 0.0
    %530 = vmatpush1.xpose.msra.mxu0 0.0
    %531 = vmatprep.mubr.f32.mxu0 0.0
    %532 = vmatmul.mubr.f32.gmra.mrb[0].mxu0 %v466
    %v533 = vpop.f32.mrb[0].mxu0
    %v534 = vadd.f32 0.0, %v533
    %v535 = vpop.f32.mrb[0].mxu0
    %536 = vdwg.mxu0
    %538 = vset.pattern.permute.xlu0 127
    %539 = vperm.xlu0 %538, %v456
    %v540 = vpop.permute.xlu0 %539
    %543 = vset.pattern.permute.xlu0 127
    %544 = vperm.xlu0 %543, %v461
    %v545 = vpop.permute.xlu0 %544
    %v547 = vlaneseq
    %v548 = vshrl.u32 %v547, 7
    %v549 = vsub.s32 0, %v548
    %v550 = vrot.slane %v534, %v549
    %v551 = vadd.f32 %v540, %v550
    %v552 = vadd.f32 %v545, %v550
    %v553 = vxor.u32 %v551, 2147483648
    %v554 = vxor.u32 %v552, 2147483648
    %v555 = vmul.f32 %v553, 1.442695
    %v556 = vpow.pop %v555
    %v557 = vmul.f32 %v554, 1.442695
    %v558 = vpow.pop %v557
    %v559 = vadd.f32 %v556, 1.0
    %v560 = vadd.f32 %v558, 1.0
    %v561 = vrcp.pop %v559
    %v562 = vmul.f32 1.0, %v561
    %v563 = vrcp.pop %v560
    %v564 = vmul.f32 1.0, %v563
    %v565 = vadd.f32 %v562, %v59
    %v566 = vadd.f32 %v564, %v60
    %v567 = vmul.f32 %v565, 1.442695
    %v568 = vpow.pop %v567
    %v569 = vmul.f32 %v566, 1.442695
    %v570 = vpow.pop %v569
    %v571 = vsel %vm266, %v568, 0.0
    %572 = vadd.xlane.f32.xlu0 %v571
    %v573 = vpop.xlane.xlu0 %572
    %v574 = vsel %vm266, %v570, 0.0
    %575 = vadd.xlane.f32.xlu0 %v574
    %v576 = vpop.xlane.xlu0 %575
    %v577 = vadd.f32 %v573, 1e-16
    %v578 = vadd.f32 %v576, 1e-16
    %v580 = vsel %vm266, %v568, 0
    %v583 = vsel %vm266, %v570, 0
    %585 = vmatprep.subr.mxu0 0.0
    %586 = vmatpush1.msra.mxu0 %v464
    %587 = vmatprep.subr.mxu0 0.0
    %588 = vmatpush1.msra.mxu0 %v465
    %589 = vmatprep.subr.mxu0 0.0
    %590 = vmatpush1.msra.mxu0 0.0
    %591 = vmatprep.subr.mxu0 0.0
    %592 = vmatpush1.msra.mxu0 0.0
    %593 = vmatprep.subr.mxu0 0.0
    %594 = vmatpush1.msra.mxu0 0.0
    %595 = vmatprep.subr.mxu0 0.0
    %596 = vmatpush1.msra.mxu0 0.0
    %597 = vmatprep.subr.mxu0 0.0
    %598 = vmatpush1.msra.mxu0 0.0
    %599 = vmatprep.subr.mxu0 0.0
    %600 = vmatpush1.msra.mxu0 0.0
    %601 = vmatprep.subr.mxu0 0.0
    %602 = vmatpush1.msra.mxu0 0.0
    %603 = vmatprep.subr.mxu0 0.0
    %604 = vmatpush1.msra.mxu0 0.0
    %605 = vmatprep.subr.mxu0 0.0
    %606 = vmatpush1.msra.mxu0 0.0
    %607 = vmatprep.subr.mxu0 0.0
    %608 = vmatpush1.msra.mxu0 0.0
    %609 = vmatprep.subr.mxu0 0.0
    %610 = vmatpush1.msra.mxu0 0.0
    %611 = vmatprep.subr.mxu0 0.0
    %612 = vmatpush1.msra.mxu0 0.0
    %613 = vmatprep.subr.mxu0 0.0
    %614 = vmatpush1.msra.mxu0 0.0
    %615 = vmatprep.subr.mxu0 0.0
    %616 = vmatpush1.msra.mxu0 0.0
    %617 = vmatprep.subr.mxu0 0.0
    %618 = vmatpush1.msra.mxu0 0.0
    %619 = vmatprep.subr.mxu0 0.0
    %620 = vmatpush1.msra.mxu0 0.0
    %621 = vmatprep.subr.mxu0 0.0
    %622 = vmatpush1.msra.mxu0 0.0
    %623 = vmatprep.subr.mxu0 0.0
    %624 = vmatpush1.msra.mxu0 0.0
    %625 = vmatprep.subr.mxu0 0.0
    %626 = vmatpush1.msra.mxu0 0.0
    %627 = vmatprep.subr.mxu0 0.0
    %628 = vmatpush1.msra.mxu0 0.0
    %629 = vmatprep.subr.mxu0 0.0
    %630 = vmatpush1.msra.mxu0 0.0
    %631 = vmatprep.subr.mxu0 0.0
    %632 = vmatpush1.msra.mxu0 0.0
    %633 = vmatprep.subr.mxu0 0.0
    %634 = vmatpush1.msra.mxu0 0.0
    %635 = vmatprep.subr.mxu0 0.0
    %636 = vmatpush1.msra.mxu0 0.0
    %637 = vmatprep.subr.mxu0 0.0
    %638 = vmatpush1.msra.mxu0 0.0
    %639 = vmatprep.subr.mxu0 0.0
    %640 = vmatpush1.msra.mxu0 0.0
    %641 = vmatprep.subr.mxu0 0.0
    %642 = vmatpush1.msra.mxu0 0.0
    %643 = vmatprep.subr.mxu0 0.0
    %644 = vmatpush1.msra.mxu0 0.0
    %645 = vmatprep.subr.mxu0 0.0
    %646 = vmatpush1.msra.mxu0 0.0
    %647 = vmatprep.subr.mxu0 0.0
    %648 = vmatpush1.msra.mxu0 0.0
    %649 = vmatprep.mubr.f32.mxu0 0.0
    %650 = vmatmul.mubr.f32.gmra.mrb[0].mxu0 %v580
    %v651 = vpop.f32.mrb[0].mxu0
    %v652 = vadd.f32 0.0, %v651
    %v653 = vpop.f32.mrb[0].mxu0
    %654 = vmatprep.mubr.f32.mxu0 0.0
    %655 = vmatmul.mubr.f32.gmra.mrb[0].mxu0 %v583
    %v656 = vpop.f32.mrb[0].mxu0
    %v657 = vadd.f32 0.0, %v656
    %v658 = vpop.f32.mrb[0].mxu0
    %659 = vdwg.mxu0
    %v660 = vrcp.pop %v577
    %v661 = vrcp.pop %v578
    %v662 = vmul.f32 %v652, %v660
    %v663 = vmul.f32 %v657, %v661
    %vm664 = vcmp.gt.f32.partialorder %v662, 0.0
    %vm665 = vcmp.gt.f32.partialorder %v663, 0.0
    %v666 = vmin.f32 %v662, 0.0
    %v667 = vmin.f32 %v663, 0.0
    %v668 = vmul.f32 %v666, 1.442695
    %v669 = vpow.pop %v668
    %v670 = vmul.f32 %v667, 1.442695
    %v671 = vpow.pop %v670
    %v672 = vsub.f32 %v669, 1.0
    %v673 = vsub.f32 %v671, 1.0
    %v674 = vsel %vm664, %v662, %v672
    %v675 = vsel %vm665, %v663, %v673
    %s676 = scalar_lea.vmem [#allocation7], 256
    %v677 = vld [vmem:[%s676] sm:$0xff]
    %v678 = vld [vmem:[%s676 + $0x8] sm:$0xff]
    %v679 = vld [vmem:[%s676 + $0x10] sm:$0xff]
    %v680 = vld [vmem:[%s676 + $0x18] sm:$0xff]
    %v681 = vld [vmem:[%s676 + $0x20] sm:$0xff]
    %v682 = vld [vmem:[%s676 + $0x28] sm:$0xff]
    %v683 = vld [vmem:[%s676 + $0x30] sm:$0xff]
    %v684 = vld [vmem:[%s676 + $0x38] sm:$0xff]
    %v685 = vld [vmem:[%s676 + $0x40] sm:$0xff]
    %v686 = vld [vmem:[%s676 + $0x48] sm:$0xff]
    %v687 = vld [vmem:[%s676 + $0x50] sm:$0xff]
    %v688 = vld [vmem:[%s676 + $0x58] sm:$0xff]
    %v689 = vld [vmem:[%s676 + $0x60] sm:$0xff]
    %v690 = vld [vmem:[%s676 + $0x68] sm:$0xff]
    %v691 = vld [vmem:[%s676 + $0x70] sm:$0xff]
    %v692 = vld [vmem:[%s676 + $0x78] sm:$0xff]
    %693 = vmatprep.subr.mxu0 0.0
    %694 = vmatpush1.msra.mxu0 %v677
    %695 = vmatprep.subr.mxu0 0.0
    %696 = vmatpush1.msra.mxu0 %v678
    %697 = vmatprep.subr.mxu0 0.0
    %698 = vmatpush1.msra.mxu0 %v679
    %699 = vmatprep.subr.mxu0 0.0
    %700 = vmatpush1.msra.mxu0 %v680
    %701 = vmatprep.subr.mxu0 0.0
    %702 = vmatpush1.msra.mxu0 %v681
    %703 = vmatprep.subr.mxu0 0.0
    %704 = vmatpush1.msra.mxu0 %v682
    %705 = vmatprep.subr.mxu0 0.0
    %706 = vmatpush1.msra.mxu0 %v683
    %707 = vmatprep.subr.mxu0 0.0
    %708 = vmatpush1.msra.mxu0 %v684
    %709 = vmatprep.subr.mxu0 0.0
    %710 = vmatpush1.msra.mxu0 %v685
    %711 = vmatprep.subr.mxu0 0.0
    %712 = vmatpush1.msra.mxu0 %v686
    %713 = vmatprep.subr.mxu0 0.0
    %714 = vmatpush1.msra.mxu0 %v687
    %715 = vmatprep.subr.mxu0 0.0
    %716 = vmatpush1.msra.mxu0 %v688
    %717 = vmatprep.subr.mxu0 0.0
    %718 = vmatpush1.msra.mxu0 %v689
    %719 = vmatprep.subr.mxu0 0.0
    %720 = vmatpush1.msra.mxu0 %v690
    %721 = vmatprep.subr.mxu0 0.0
    %722 = vmatpush1.msra.mxu0 %v691
    %723 = vmatprep.subr.mxu0 0.0
    %724 = vmatpush1.msra.mxu0 %v692
    %725 = vmatprep.subr.mxu0 0.0
    %726 = vmatpush1.msra.mxu0 0.0
    %727 = vmatprep.subr.mxu0 0.0
    %728 = vmatpush1.msra.mxu0 0.0
    %729 = vmatprep.subr.mxu0 0.0
    %730 = vmatpush1.msra.mxu0 0.0
    %731 = vmatprep.subr.mxu0 0.0
    %732 = vmatpush1.msra.mxu0 0.0
    %733 = vmatprep.subr.mxu0 0.0
    %734 = vmatpush1.msra.mxu0 0.0
    %735 = vmatprep.subr.mxu0 0.0
    %736 = vmatpush1.msra.mxu0 0.0
    %737 = vmatprep.subr.mxu0 0.0
    %738 = vmatpush1.msra.mxu0 0.0
    %739 = vmatprep.subr.mxu0 0.0
    %740 = vmatpush1.msra.mxu0 0.0
    %741 = vmatprep.subr.mxu0 0.0
    %742 = vmatpush1.msra.mxu0 0.0
    %743 = vmatprep.subr.mxu0 0.0
    %744 = vmatpush1.msra.mxu0 0.0
    %745 = vmatprep.subr.mxu0 0.0
    %746 = vmatpush1.msra.mxu0 0.0
    %747 = vmatprep.subr.mxu0 0.0
    %748 = vmatpush1.msra.mxu0 0.0
    %749 = vmatprep.subr.mxu0 0.0
    %750 = vmatpush1.msra.mxu0 0.0
    %751 = vmatprep.subr.mxu0 0.0
    %752 = vmatpush1.msra.mxu0 0.0
    %753 = vmatprep.subr.mxu0 0.0
    %754 = vmatpush1.msra.mxu0 0.0
    %755 = vmatprep.subr.mxu0 0.0
    %756 = vmatpush1.msra.mxu0 0.0
    %757 = vmatprep.mubr.f32.mxu0 0.0
    %758 = vmatmul.mubr.f32.gmra.mrb[0].mxu0 %v674
    %v759 = vpop.f32.mrb[0].mxu0
    %v760 = vadd.f32 0.0, %v759
    %v761 = vpop.f32.mrb[0].mxu0
    %762 = vmatprep.mubr.f32.mxu0 0.0
    %763 = vmatmul.mubr.f32.gmra.mrb[0].mxu0 %v675
    %v764 = vpop.f32.mrb[0].mxu0
    %v765 = vadd.f32 0.0, %v764
    %v766 = vpop.f32.mrb[0].mxu0
    %767 = vdwg.mxu0
    %v768 = vmul.f32 %v760, %v67
    %v769 = vmul.f32 %v765, %v67
    %v770 = vld [vmem:[%s3 + $0x2] sm:$0x1]
    %771 = vmatprep.subr.mxu0 0.0
    %772 = vmatpush1.xpose.msra.mxu0 %v768
    %773 = vmatprep.subr.mxu0 0.0
    %774 = vmatpush1.xpose.msra.mxu0 %v769
    %775 = vmatprep.subr.mxu0 0.0
    %776 = vmatpush1.xpose.msra.mxu0 0.0
    %777 = vmatprep.subr.mxu0 0.0
    %778 = vmatpush1.xpose.msra.mxu0 0.0
    %779 = vmatprep.subr.mxu0 0.0
    %780 = vmatpush1.xpose.msra.mxu0 0.0
    %781 = vmatprep.subr.mxu0 0.0
    %782 = vmatpush1.xpose.msra.mxu0 0.0
    %783 = vmatprep.subr.mxu0 0.0
    %784 = vmatpush1.xpose.msra.mxu0 0.0
    %785 = vmatprep.subr.mxu0 0.0
    %786 = vmatpush1.xpose.msra.mxu0 0.0
    %787 = vmatprep.subr.mxu0 0.0
    %788 = vmatpush1.xpose.msra.mxu0 0.0
    %789 = vmatprep.subr.mxu0 0.0
    %790 = vmatpush1.xpose.msra.mxu0 0.0
    %791 = vmatprep.subr.mxu0 0.0
    %792 = vmatpush1.xpose.msra.mxu0 0.0
    %793 = vmatprep.subr.mxu0 0.0
    %794 = vmatpush1.xpose.msra.mxu0 0.0
    %795 = vmatprep.subr.mxu0 0.0
    %796 = vmatpush1.xpose.msra.mxu0 0.0
    %797 = vmatprep.subr.mxu0 0.0
    %798 = vmatpush1.xpose.msra.mxu0 0.0
    %799 = vmatprep.subr.mxu0 0.0
    %800 = vmatpush1.xpose.msra.mxu0 0.0
    %801 = vmatprep.subr.mxu0 0.0
    %802 = vmatpush1.xpose.msra.mxu0 0.0
    %803 = vmatprep.subr.mxu0 0.0
    %804 = vmatpush1.xpose.msra.mxu0 0.0
    %805 = vmatprep.subr.mxu0 0.0
    %806 = vmatpush1.xpose.msra.mxu0 0.0
    %807 = vmatprep.subr.mxu0 0.0
    %808 = vmatpush1.xpose.msra.mxu0 0.0
    %809 = vmatprep.subr.mxu0 0.0
    %810 = vmatpush1.xpose.msra.mxu0 0.0
    %811 = vmatprep.subr.mxu0 0.0
    %812 = vmatpush1.xpose.msra.mxu0 0.0
    %813 = vmatprep.subr.mxu0 0.0
    %814 = vmatpush1.xpose.msra.mxu0 0.0
    %815 = vmatprep.subr.mxu0 0.0
    %816 = vmatpush1.xpose.msra.mxu0 0.0
    %817 = vmatprep.subr.mxu0 0.0
    %818 = vmatpush1.xpose.msra.mxu0 0.0
    %819 = vmatprep.subr.mxu0 0.0
    %820 = vmatpush1.xpose.msra.mxu0 0.0
    %821 = vmatprep.subr.mxu0 0.0
    %822 = vmatpush1.xpose.msra.mxu0 0.0
    %823 = vmatprep.subr.mxu0 0.0
    %824 = vmatpush1.xpose.msra.mxu0 0.0
    %825 = vmatprep.subr.mxu0 0.0
    %826 = vmatpush1.xpose.msra.mxu0 0.0
    %827 = vmatprep.subr.mxu0 0.0
    %828 = vmatpush1.xpose.msra.mxu0 0.0
    %829 = vmatprep.subr.mxu0 0.0
    %830 = vmatpush1.xpose.msra.mxu0 0.0
    %831 = vmatprep.subr.mxu0 0.0
    %832 = vmatpush1.xpose.msra.mxu0 0.0
    %833 = vmatprep.subr.mxu0 0.0
    %834 = vmatpush1.xpose.msra.mxu0 0.0
    %835 = vmatprep.mubr.f32.mxu0 0.0
    %836 = vmatmul.mubr.f32.gmra.mrb[0].mxu0 %v770
    %v837 = vpop.f32.mrb[0].mxu0
    %v838 = vadd.f32 0.0, %v837
    %v839 = vpop.f32.mrb[0].mxu0
    %840 = vdwg.mxu0
    %842 = vset.pattern.permute.xlu0 127
    %843 = vperm.xlu0 %842, %v760
    %v844 = vpop.permute.xlu0 %843
    %847 = vset.pattern.permute.xlu0 127
    %848 = vperm.xlu0 %847, %v765
    %v849 = vpop.permute.xlu0 %848
    %v851 = vlaneseq
    %v852 = vshrl.u32 %v851, 7
    %v853 = vsub.s32 0, %v852
    %v854 = vrot.slane %v838, %v853
    %v855 = vadd.f32 %v844, %v854
    %v856 = vadd.f32 %v849, %v854
    %v857 = vxor.u32 %v855, 2147483648
    %v858 = vxor.u32 %v856, 2147483648
    %v859 = vmul.f32 %v857, 1.442695
    %v860 = vpow.pop %v859
    %v861 = vmul.f32 %v858, 1.442695
    %v862 = vpow.pop %v861
    %v863 = vadd.f32 %v860, 1.0
    %v864 = vadd.f32 %v862, 1.0
    %v865 = vrcp.pop %v863
    %v866 = vmul.f32 1.0, %v865
    %v867 = vrcp.pop %v864
    %v868 = vmul.f32 1.0, %v867
    %v869 = vadd.f32 %v866, %v59
    %v870 = vadd.f32 %v868, %v60
    %v871 = vmul.f32 %v869, 1.442695
    %v872 = vpow.pop %v871
    %v873 = vmul.f32 %v870, 1.442695
    %v874 = vpow.pop %v873
    %v875 = vsel %vm266, %v872, 0.0
    %876 = vadd.xlane.f32.xlu0 %v875
    %v877 = vpop.xlane.xlu0 %876
    %v878 = vsel %vm266, %v874, 0.0
    %879 = vadd.xlane.f32.xlu0 %v878
    %v880 = vpop.xlane.xlu0 %879
    %v881 = vadd.f32 %v877, 1e-16
    %v882 = vadd.f32 %v880, 1e-16
    %v884 = vsel %vm266, %v872, 0
    %v887 = vsel %vm266, %v874, 0
    %889 = vmatprep.subr.mxu0 0.0
    %890 = vmatpush1.msra.mxu0 %v768
    %891 = vmatprep.subr.mxu0 0.0
    %892 = vmatpush1.msra.mxu0 %v769
    %893 = vmatprep.subr.mxu0 0.0
    %894 = vmatpush1.msra.mxu0 0.0
    %895 = vmatprep.subr.mxu0 0.0
    %896 = vmatpush1.msra.mxu0 0.0
    %897 = vmatprep.subr.mxu0 0.0
    %898 = vmatpush1.msra.mxu0 0.0
    %899 = vmatprep.subr.mxu0 0.0
    %900 = vmatpush1.msra.mxu0 0.0
    %901 = vmatprep.subr.mxu0 0.0
    %902 = vmatpush1.msra.mxu0 0.0
    %903 = vmatprep.subr.mxu0 0.0
    %904 = vmatpush1.msra.mxu0 0.0
    %905 = vmatprep.subr.mxu0 0.0
    %906 = vmatpush1.msra.mxu0 0.0
    %907 = vmatprep.subr.mxu0 0.0
    %908 = vmatpush1.msra.mxu0 0.0
    %909 = vmatprep.subr.mxu0 0.0
    %910 = vmatpush1.msra.mxu0 0.0
    %911 = vmatprep.subr.mxu0 0.0
    %912 = vmatpush1.msra.mxu0 0.0
    %913 = vmatprep.subr.mxu0 0.0
    %914 = vmatpush1.msra.mxu0 0.0
    %915 = vmatprep.subr.mxu0 0.0
    %916 = vmatpush1.msra.mxu0 0.0
    %917 = vmatprep.subr.mxu0 0.0
    %918 = vmatpush1.msra.mxu0 0.0
    %919 = vmatprep.subr.mxu0 0.0
    %920 = vmatpush1.msra.mxu0 0.0
    %921 = vmatprep.subr.mxu0 0.0
    %922 = vmatpush1.msra.mxu0 0.0
    %923 = vmatprep.subr.mxu0 0.0
    %924 = vmatpush1.msra.mxu0 0.0
    %925 = vmatprep.subr.mxu0 0.0
    %926 = vmatpush1.msra.mxu0 0.0
    %927 = vmatprep.subr.mxu0 0.0
    %928 = vmatpush1.msra.mxu0 0.0
    %929 = vmatprep.subr.mxu0 0.0
    %930 = vmatpush1.msra.mxu0 0.0
    %931 = vmatprep.subr.mxu0 0.0
    %932 = vmatpush1.msra.mxu0 0.0
    %933 = vmatprep.subr.mxu0 0.0
    %934 = vmatpush1.msra.mxu0 0.0
    %935 = vmatprep.subr.mxu0 0.0
    %936 = vmatpush1.msra.mxu0 0.0
    %937 = vmatprep.subr.mxu0 0.0
    %938 = vmatpush1.msra.mxu0 0.0
    %939 = vmatprep.subr.mxu0 0.0
    %940 = vmatpush1.msra.mxu0 0.0
    %941 = vmatprep.subr.mxu0 0.0
    %942 = vmatpush1.msra.mxu0 0.0
    %943 = vmatprep.subr.mxu0 0.0
    %944 = vmatpush1.msra.mxu0 0.0
    %945 = vmatprep.subr.mxu0 0.0
    %946 = vmatpush1.msra.mxu0 0.0
    %947 = vmatprep.subr.mxu0 0.0
    %948 = vmatpush1.msra.mxu0 0.0
    %949 = vmatprep.subr.mxu0 0.0
    %950 = vmatpush1.msra.mxu0 0.0
    %951 = vmatprep.subr.mxu0 0.0
    %952 = vmatpush1.msra.mxu0 0.0
    %953 = vmatprep.mubr.f32.mxu0 0.0
    %954 = vmatmul.mubr.f32.gmra.mrb[0].mxu0 %v884
    %v955 = vpop.f32.mrb[0].mxu0
    %v956 = vadd.f32 0.0, %v955
    %v957 = vpop.f32.mrb[0].mxu0
    %958 = vmatprep.mubr.f32.mxu0 0.0
    %959 = vmatmul.mubr.f32.gmra.mrb[0].mxu0 %v887
    %v960 = vpop.f32.mrb[0].mxu0
    %v961 = vadd.f32 0.0, %v960
    %v962 = vpop.f32.mrb[0].mxu0
    %963 = vdwg.mxu0
    %v964 = vrcp.pop %v881
    %v965 = vmul.f32 %v956, %v964
    %v966 = vrcp.pop %v882
    %v967 = vmul.f32 %v961, %v966
    %968 = vst [vmem:[#allocation8] sm:$0xff] %v965
    %969 = vst [vmem:[#allocation8 + $0x8] sm:$0xff] %v967
    %v970 = vld [vmem:[%s676] sm:$0xff]
    %v971 = vld [vmem:[%s676 + $0x8] sm:$0xff]
    %v972 = vld [vmem:[%s676 + $0x10] sm:$0xff]
    %v973 = vld [vmem:[%s676 + $0x18] sm:$0xff]
    %v974 = vld [vmem:[%s676 + $0x20] sm:$0xff]
    %v975 = vld [vmem:[%s676 + $0x28] sm:$0xff]
    %v976 = vld [vmem:[%s676 + $0x30] sm:$0xff]
    %v977 = vld [vmem:[%s676 + $0x38] sm:$0xff]
    %v978 = vld [vmem:[%s676 + $0x40] sm:$0xff]
    %v979 = vld [vmem:[%s676 + $0x48] sm:$0xff]
    %v980 = vld [vmem:[%s676 + $0x50] sm:$0xff]
    %v981 = vld [vmem:[%s676 + $0x58] sm:$0xff]
    %v982 = vld [vmem:[%s676 + $0x60] sm:$0xff]
    %v983 = vld [vmem:[%s676 + $0x68] sm:$0xff]
    %v984 = vld [vmem:[%s676 + $0x70] sm:$0xff]
    %v985 = vld [vmem:[%s676 + $0x78] sm:$0xff]
    %986 = vmatprep.subr.mxu0 0.0
    %987 = vmatpush1.xpose.msra.mxu0 %v970
    %988 = vmatprep.subr.mxu0 0.0
    %989 = vmatpush1.xpose.msra.mxu0 %v971
    %990 = vmatprep.subr.mxu0 0.0
    %991 = vmatpush1.xpose.msra.mxu0 %v972
    %992 = vmatprep.subr.mxu0 0.0
    %993 = vmatpush1.xpose.msra.mxu0 %v973
    %994 = vmatprep.subr.mxu0 0.0
    %995 = vmatpush1.xpose.msra.mxu0 %v974
    %996 = vmatprep.subr.mxu0 0.0
    %997 = vmatpush1.xpose.msra.mxu0 %v975
    %998 = vmatprep.subr.mxu0 0.0
    %999 = vmatpush1.xpose.msra.mxu0 %v976
    %1000 = vmatprep.subr.mxu0 0.0
    %1001 = vmatpush1.xpose.msra.mxu0 %v977
    %1002 = vmatprep.subr.mxu0 0.0
    %1003 = vmatpush1.xpose.msra.mxu0 %v978
    %1004 = vmatprep.subr.mxu0 0.0
    %1005 = vmatpush1.xpose.msra.mxu0 %v979
    %1006 = vmatprep.subr.mxu0 0.0
    %1007 = vmatpush1.xpose.msra.mxu0 %v980
    %1008 = vmatprep.subr.mxu0 0.0
    %1009 = vmatpush1.xpose.msra.mxu0 %v981
    %1010 = vmatprep.subr.mxu0 0.0
    %1011 = vmatpush1.xpose.msra.mxu0 %v982
    %1012 = vmatprep.subr.mxu0 0.0
    %1013 = vmatpush1.xpose.msra.mxu0 %v983
    %1014 = vmatprep.subr.mxu0 0.0
    %1015 = vmatpush1.xpose.msra.mxu0 %v984
    %1016 = vmatprep.subr.mxu0 0.0
    %1017 = vmatpush1.xpose.msra.mxu0 %v985
    %1018 = vmatprep.subr.mxu0 0.0
    %1019 = vmatpush1.xpose.msra.mxu0 0.0
    %1020 = vmatprep.subr.mxu0 0.0
    %1021 = vmatpush1.xpose.msra.mxu0 0.0
    %1022 = vmatprep.subr.mxu0 0.0
    %1023 = vmatpush1.xpose.msra.mxu0 0.0
    %1024 = vmatprep.subr.mxu0 0.0
    %1025 = vmatpush1.xpose.msra.mxu0 0.0
    %1026 = vmatprep.subr.mxu0 0.0
    %1027 = vmatpush1.xpose.msra.mxu0 0.0
    %1028 = vmatprep.subr.mxu0 0.0
    %1029 = vmatpush1.xpose.msra.mxu0 0.0
    %1030 = vmatprep.subr.mxu0 0.0
    %1031 = vmatpush1.xpose.msra.mxu0 0.0
    %1032 = vmatprep.subr.mxu0 0.0
    %1033 = vmatpush1.xpose.msra.mxu0 0.0
    %1034 = vmatprep.subr.mxu0 0.0
    %1035 = vmatpush1.xpose.msra.mxu0 0.0
    %1036 = vmatprep.subr.mxu0 0.0
    %1037 = vmatpush1.xpose.msra.mxu0 0.0
    %1038 = vmatprep.subr.mxu0 0.0
    %1039 = vmatpush1.xpose.msra.mxu0 0.0
    %1040 = vmatprep.subr.mxu0 0.0
    %1041 = vmatpush1.xpose.msra.mxu0 0.0
    %1042 = vmatprep.subr.mxu0 0.0
    %1043 = vmatpush1.xpose.msra.mxu0 0.0
    %1044 = vmatprep.subr.mxu0 0.0
    %1045 = vmatpush1.xpose.msra.mxu0 0.0
    %1046 = vmatprep.subr.mxu0 0.0
    %1047 = vmatpush1.xpose.msra.mxu0 0.0
    %1048 = vmatprep.subr.mxu0 0.0
    %1049 = vmatpush1.xpose.msra.mxu0 0.0
    %1050 = vmatprep.mubr.f32.mxu0 0.0
    %1051 = vmatmul.mubr.f32.gmra.mrb[0].mxu0 %v965
    %v1052 = vpop.f32.mrb[0].mxu0
    %v1053 = vadd.f32 0.0, %v1052
    %v1054 = vpop.f32.mrb[0].mxu0
    %1055 = vmatprep.mubr.f32.mxu0 0.0
    %1056 = vmatmul.mubr.f32.gmra.mrb[0].mxu0 %v967
    %v1057 = vpop.f32.mrb[0].mxu0
    %v1058 = vadd.f32 0.0, %v1057
    %v1059 = vpop.f32.mrb[0].mxu0
    %1060 = vdwg.mxu0
    %1061 = vmatprep.subr.mxu0 0.0
    %1062 = vmatpush1.msra.mxu0 %v1053
    %1063 = vmatprep.subr.mxu0 0.0
    %1064 = vmatpush1.msra.mxu0 %v1058
    %1065 = vmatprep.subr.mxu0 0.0
    %1066 = vmatpush1.msra.mxu0 0.0
    %1067 = vmatprep.subr.mxu0 0.0
    %1068 = vmatpush1.msra.mxu0 0.0
    %1069 = vmatprep.subr.mxu0 0.0
    %1070 = vmatpush1.msra.mxu0 0.0
    %1071 = vmatprep.subr.mxu0 0.0
    %1072 = vmatpush1.msra.mxu0 0.0
    %1073 = vmatprep.subr.mxu0 0.0
    %1074 = vmatpush1.msra.mxu0 0.0
    %1075 = vmatprep.subr.mxu0 0.0
    %1076 = vmatpush1.msra.mxu0 0.0
    %1077 = vmatprep.subr.mxu0 0.0
    %1078 = vmatpush1.msra.mxu0 0.0
    %1079 = vmatprep.subr.mxu0 0.0
    %1080 = vmatpush1.msra.mxu0 0.0
    %1081 = vmatprep.subr.mxu0 0.0
    %1082 = vmatpush1.msra.mxu0 0.0
    %1083 = vmatprep.subr.mxu0 0.0
    %1084 = vmatpush1.msra.mxu0 0.0
    %1085 = vmatprep.subr.mxu0 0.0
    %1086 = vmatpush1.msra.mxu0 0.0
    %1087 = vmatprep.subr.mxu0 0.0
    %1088 = vmatpush1.msra.mxu0 0.0
    %1089 = vmatprep.subr.mxu0 0.0
    %1090 = vmatpush1.msra.mxu0 0.0
    %1091 = vmatprep.subr.mxu0 0.0
    %1092 = vmatpush1.msra.mxu0 0.0
    %1093 = vmatprep.subr.mxu0 0.0
    %1094 = vmatpush1.msra.mxu0 0.0
    %1095 = vmatprep.subr.mxu0 0.0
    %1096 = vmatpush1.msra.mxu0 0.0
    %1097 = vmatprep.subr.mxu0 0.0
    %1098 = vmatpush1.msra.mxu0 0.0
    %1099 = vmatprep.subr.mxu0 0.0
    %1100 = vmatpush1.msra.mxu0 0.0
    %1101 = vmatprep.subr.mxu0 0.0
    %1102 = vmatpush1.msra.mxu0 0.0
    %1103 = vmatprep.subr.mxu0 0.0
    %1104 = vmatpush1.msra.mxu0 0.0
    %1105 = vmatprep.subr.mxu0 0.0
    %1106 = vmatpush1.msra.mxu0 0.0
    %1107 = vmatprep.subr.mxu0 0.0
    %1108 = vmatpush1.msra.mxu0 0.0
    %1109 = vmatprep.subr.mxu0 0.0
    %1110 = vmatpush1.msra.mxu0 0.0
    %1111 = vmatprep.subr.mxu0 0.0
    %1112 = vmatpush1.msra.mxu0 0.0
    %1113 = vmatprep.subr.mxu0 0.0
    %1114 = vmatpush1.msra.mxu0 0.0
    %1115 = vmatprep.subr.mxu0 0.0
    %1116 = vmatpush1.msra.mxu0 0.0
    %1117 = vmatprep.subr.mxu0 0.0
    %1118 = vmatpush1.msra.mxu0 0.0
    %1119 = vmatprep.subr.mxu0 0.0
    %1120 = vmatpush1.msra.mxu0 0.0
    %1121 = vmatprep.subr.mxu0 0.0
    %1122 = vmatpush1.msra.mxu0 0.0
    %1123 = vmatprep.subr.mxu0 0.0
    %1124 = vmatpush1.msra.mxu0 0.0
    %1125 = vmatprep.mubr.f32.mxu0 0.0
    %1126 = vmatmul.mubr.f32.gmra.mrb[0].mxu0 %v276
    %v1127 = vpop.f32.mrb[0].mxu0
    %v1128 = vadd.f32 0.0, %v1127
    %v1129 = vpop.f32.mrb[0].mxu0
    %1130 = vmatprep.mubr.f32.mxu0 0.0
    %1131 = vmatmul.mubr.f32.gmra.mrb[0].mxu0 %v279
    %v1132 = vpop.f32.mrb[0].mxu0
    %v1133 = vadd.f32 0.0, %v1132
    %v1134 = vpop.f32.mrb[0].mxu0
    %1135 = vdwg.mxu0
    %v1136 = vmul.f32 %v1128, %v356
    %v1137 = vmul.f32 %v1133, %v357
    %vm1138 = vcmp.gt.f32.partialorder %v1136, 0.0
    %vm1139 = vcmp.gt.f32.partialorder %v1137, 0.0
    %v1140 = vmin.f32 %v1136, 0.0
    %v1141 = vmin.f32 %v1137, 0.0
    %v1142 = vmul.f32 %v1140, 1.442695
    %v1143 = vpow.pop %v1142
    %v1144 = vmul.f32 %v1141, 1.442695
    %v1145 = vpow.pop %v1144
    %v1146 = vsub.f32 %v1143, 1.0
    %v1147 = vsub.f32 %v1145, 1.0
    %v1148 = vsel %vm1138, %v1136, %v1146
    %v1149 = vsel %vm1139, %v1137, %v1147
    %s1150 = scalar_lea.vmem [#allocation7], 384
    %v1151 = vld [vmem:[%s1150] sm:$0xff]
    %v1152 = vld [vmem:[%s1150 + $0x8] sm:$0xff]
    %v1153 = vld [vmem:[%s1150 + $0x10] sm:$0xff]
    %v1154 = vld [vmem:[%s1150 + $0x18] sm:$0xff]
    %v1155 = vld [vmem:[%s1150 + $0x20] sm:$0xff]
    %v1156 = vld [vmem:[%s1150 + $0x28] sm:$0xff]
    %v1157 = vld [vmem:[%s1150 + $0x30] sm:$0xff]
    %v1158 = vld [vmem:[%s1150 + $0x38] sm:$0xff]
    %v1159 = vld [vmem:[%s1150 + $0x40] sm:$0xff]
    %v1160 = vld [vmem:[%s1150 + $0x48] sm:$0xff]
    %v1161 = vld [vmem:[%s1150 + $0x50] sm:$0xff]
    %v1162 = vld [vmem:[%s1150 + $0x58] sm:$0xff]
    %v1163 = vld [vmem:[%s1150 + $0x60] sm:$0xff]
    %v1164 = vld [vmem:[%s1150 + $0x68] sm:$0xff]
    %v1165 = vld [vmem:[%s1150 + $0x70] sm:$0xff]
    %v1166 = vld [vmem:[%s1150 + $0x78] sm:$0xff]
    %1167 = vmatprep.subr.mxu0 0.0
    %1168 = vmatpush1.msra.mxu0 %v1151
    %1169 = vmatprep.subr.mxu0 0.0
    %1170 = vmatpush1.msra.mxu0 %v1152
    %1171 = vmatprep.subr.mxu0 0.0
    %1172 = vmatpush1.msra.mxu0 %v1153
    %1173 = vmatprep.subr.mxu0 0.0
    %1174 = vmatpush1.msra.mxu0 %v1154
    %1175 = vmatprep.subr.mxu0 0.0
    %1176 = vmatpush1.msra.mxu0 %v1155
    %1177 = vmatprep.subr.mxu0 0.0
    %1178 = vmatpush1.msra.mxu0 %v1156
    %1179 = vmatprep.subr.mxu0 0.0
    %1180 = vmatpush1.msra.mxu0 %v1157
    %1181 = vmatprep.subr.mxu0 0.0
    %1182 = vmatpush1.msra.mxu0 %v1158
    %1183 = vmatprep.subr.mxu0 0.0
    %1184 = vmatpush1.msra.mxu0 %v1159
    %1185 = vmatprep.subr.mxu0 0.0
    %1186 = vmatpush1.msra.mxu0 %v1160
    %1187 = vmatprep.subr.mxu0 0.0
    %1188 = vmatpush1.msra.mxu0 %v1161
    %1189 = vmatprep.subr.mxu0 0.0
    %1190 = vmatpush1.msra.mxu0 %v1162
    %1191 = vmatprep.subr.mxu0 0.0
    %1192 = vmatpush1.msra.mxu0 %v1163
    %1193 = vmatprep.subr.mxu0 0.0
    %1194 = vmatpush1.msra.mxu0 %v1164
    %1195 = vmatprep.subr.mxu0 0.0
    %1196 = vmatpush1.msra.mxu0 %v1165
    %1197 = vmatprep.subr.mxu0 0.0
    %1198 = vmatpush1.msra.mxu0 %v1166
    %1199 = vmatprep.subr.mxu0 0.0
    %1200 = vmatpush1.msra.mxu0 0.0
    %1201 = vmatprep.subr.mxu0 0.0
    %1202 = vmatpush1.msra.mxu0 0.0
    %1203 = vmatprep.subr.mxu0 0.0
    %1204 = vmatpush1.msra.mxu0 0.0
    %1205 = vmatprep.subr.mxu0 0.0
    %1206 = vmatpush1.msra.mxu0 0.0
    %1207 = vmatprep.subr.mxu0 0.0
    %1208 = vmatpush1.msra.mxu0 0.0
    %1209 = vmatprep.subr.mxu0 0.0
    %1210 = vmatpush1.msra.mxu0 0.0
    %1211 = vmatprep.subr.mxu0 0.0
    %1212 = vmatpush1.msra.mxu0 0.0
    %1213 = vmatprep.subr.mxu0 0.0
    %1214 = vmatpush1.msra.mxu0 0.0
    %1215 = vmatprep.subr.mxu0 0.0
    %1216 = vmatpush1.msra.mxu0 0.0
    %1217 = vmatprep.subr.mxu0 0.0
    %1218 = vmatpush1.msra.mxu0 0.0
    %1219 = vmatprep.subr.mxu0 0.0
    %1220 = vmatpush1.msra.mxu0 0.0
    %1221 = vmatprep.subr.mxu0 0.0
    %1222 = vmatpush1.msra.mxu0 0.0
    %1223 = vmatprep.subr.mxu0 0.0
    %1224 = vmatpush1.msra.mxu0 0.0
    %1225 = vmatprep.subr.mxu0 0.0
    %1226 = vmatpush1.msra.mxu0 0.0
    %1227 = vmatprep.subr.mxu0 0.0
    %1228 = vmatpush1.msra.mxu0 0.0
    %1229 = vmatprep.subr.mxu0 0.0
    %1230 = vmatpush1.msra.mxu0 0.0
    %1231 = vmatprep.mubr.f32.mxu0 0.0
    %1232 = vmatmul.mubr.f32.gmra.mrb[0].mxu0 %v965
    %v1233 = vpop.f32.mrb[0].mxu0
    %v1234 = vadd.f32 0.0, %v1233
    %v1235 = vpop.f32.mrb[0].mxu0
    %1236 = vmatprep.mubr.f32.mxu0 0.0
    %1237 = vmatmul.mubr.f32.gmra.mrb[0].mxu0 %v967
    %v1238 = vpop.f32.mrb[0].mxu0
    %v1239 = vadd.f32 0.0, %v1238
    %v1240 = vpop.f32.mrb[0].mxu0
    %1241 = vdwg.mxu0
    %s1242 = scalar_lea.vmem [#allocation8], 32
    %1243 = vst [vmem:[%s1242] sm:$0xff] %v1234
    %1244 = vst [vmem:[%s1242 + $0x8] sm:$0xff] %v1239
    %v1245 = vld [vmem:[#allocation7] sm:$0xff]
    %v1246 = vld [vmem:[#allocation7 + $0x8] sm:$0xff]
    %v1247 = vld [vmem:[#allocation7 + $0x10] sm:$0xff]
    %v1248 = vld [vmem:[#allocation7 + $0x18] sm:$0xff]
    %v1249 = vld [vmem:[#allocation7 + $0x20] sm:$0xff]
    %v1250 = vld [vmem:[#allocation7 + $0x28] sm:$0xff]
    %v1251 = vld [vmem:[#allocation7 + $0x30] sm:$0xff]
    %v1252 = vld [vmem:[#allocation7 + $0x38] sm:$0xff]
    %v1253 = vld [vmem:[#allocation7 + $0x40] sm:$0xff]
    %v1254 = vld [vmem:[#allocation7 + $0x48] sm:$0xff]
    %v1255 = vld [vmem:[#allocation7 + $0x50] sm:$0xff]
    %v1256 = vld [vmem:[#allocation7 + $0x58] sm:$0xff]
    %v1257 = vld [vmem:[#allocation7 + $0x60] sm:$0xff]
    %v1258 = vld [vmem:[#allocation7 + $0x68] sm:$0xff]
    %v1259 = vld [vmem:[#allocation7 + $0x70] sm:$0xff]
    %v1260 = vld [vmem:[#allocation7 + $0x78] sm:$0xff]
    %1261 = vmatprep.subr.mxu0 0.0
    %1262 = vmatpush1.xpose.msra.mxu0 %v1245
    %1263 = vmatprep.subr.mxu0 0.0
    %1264 = vmatpush1.xpose.msra.mxu0 %v1246
    %1265 = vmatprep.subr.mxu0 0.0
    %1266 = vmatpush1.xpose.msra.mxu0 %v1247
    %1267 = vmatprep.subr.mxu0 0.0
    %1268 = vmatpush1.xpose.msra.mxu0 %v1248
    %1269 = vmatprep.subr.mxu0 0.0
    %1270 = vmatpush1.xpose.msra.mxu0 %v1249
    %1271 = vmatprep.subr.mxu0 0.0
    %1272 = vmatpush1.xpose.msra.mxu0 %v1250
    %1273 = vmatprep.subr.mxu0 0.0
    %1274 = vmatpush1.xpose.msra.mxu0 %v1251
    %1275 = vmatprep.subr.mxu0 0.0
    %1276 = vmatpush1.xpose.msra.mxu0 %v1252
    %1277 = vmatprep.subr.mxu0 0.0
    %1278 = vmatpush1.xpose.msra.mxu0 %v1253
    %1279 = vmatprep.subr.mxu0 0.0
    %1280 = vmatpush1.xpose.msra.mxu0 %v1254
    %1281 = vmatprep.subr.mxu0 0.0
    %1282 = vmatpush1.xpose.msra.mxu0 %v1255
    %1283 = vmatprep.subr.mxu0 0.0
    %1284 = vmatpush1.xpose.msra.mxu0 %v1256
    %1285 = vmatprep.subr.mxu0 0.0
    %1286 = vmatpush1.xpose.msra.mxu0 %v1257
    %1287 = vmatprep.subr.mxu0 0.0
    %1288 = vmatpush1.xpose.msra.mxu0 %v1258
    %1289 = vmatprep.subr.mxu0 0.0
    %1290 = vmatpush1.xpose.msra.mxu0 %v1259
    %1291 = vmatprep.subr.mxu0 0.0
    %1292 = vmatpush1.xpose.msra.mxu0 %v1260
    %1293 = vmatprep.subr.mxu0 0.0
    %1294 = vmatpush1.xpose.msra.mxu0 0.0
    %1295 = vmatprep.subr.mxu0 0.0
    %1296 = vmatpush1.xpose.msra.mxu0 0.0
    %1297 = vmatprep.subr.mxu0 0.0
    %1298 = vmatpush1.xpose.msra.mxu0 0.0
    %1299 = vmatprep.subr.mxu0 0.0
    %1300 = vmatpush1.xpose.msra.mxu0 0.0
    %1301 = vmatprep.subr.mxu0 0.0
    %1302 = vmatpush1.xpose.msra.mxu0 0.0
    %1303 = vmatprep.subr.mxu0 0.0
    %1304 = vmatpush1.xpose.msra.mxu0 0.0
    %1305 = vmatprep.subr.mxu0 0.0
    %1306 = vmatpush1.xpose.msra.mxu0 0.0
    %1307 = vmatprep.subr.mxu0 0.0
    %1308 = vmatpush1.xpose.msra.mxu0 0.0
    %1309 = vmatprep.subr.mxu0 0.0
    %1310 = vmatpush1.xpose.msra.mxu0 0.0
    %1311 = vmatprep.subr.mxu0 0.0
    %1312 = vmatpush1.xpose.msra.mxu0 0.0
    %1313 = vmatprep.subr.mxu0 0.0
    %1314 = vmatpush1.xpose.msra.mxu0 0.0
    %1315 = vmatprep.subr.mxu0 0.0
    %1316 = vmatpush1.xpose.msra.mxu0 0.0
    %1317 = vmatprep.subr.mxu0 0.0
    %1318 = vmatpush1.xpose.msra.mxu0 0.0
    %1319 = vmatprep.subr.mxu0 0.0
    %1320 = vmatpush1.xpose.msra.mxu0 0.0
    %1321 = vmatprep.subr.mxu0 0.0
    %1322 = vmatpush1.xpose.msra.mxu0 0.0
    %1323 = vmatprep.subr.mxu0 0.0
    %1324 = vmatpush1.xpose.msra.mxu0 0.0
    %1325 = vmatprep.mubr.f32.mxu0 0.0
    %1326 = vmatmul.mubr.f32.gmra.mrb[0].mxu0 %v1148
    %v1327 = vpop.f32.mrb[0].mxu0
    %v1328 = vadd.f32 0.0, %v1327
    %v1329 = vpop.f32.mrb[0].mxu0
    %1330 = vmatprep.mubr.f32.mxu0 0.0
    %1331 = vmatmul.mubr.f32.gmra.mrb[0].mxu0 %v1149
    %v1332 = vpop.f32.mrb[0].mxu0
    %v1333 = vadd.f32 0.0, %v1332
    %v1334 = vpop.f32.mrb[0].mxu0
    %1335 = vdwg.mxu0
    %s1336 = scalar_lea.vmem [#allocation8], 16
    %1337 = vst [vmem:[%s1336] sm:$0xff] %v1328
    %1338 = vst [vmem:[%s1336 + $0x8] sm:$0xff] %v1333
    // Predicated region
    $region30: #{tpu_custom_call.1} parent=1 // pred_check
      _
    $region31: #{tpu_custom_call.1} parent=1 // pred_check_branch
      %1340 = sbr.rel (0) target = $region33
    $region32: #{tpu_custom_call.1} parent=1 // pred_region
      %s1342 = ssub.s32 768, 768
      %1343 = vsyncadd [#allocation4], %s1342
      %s1344 = sshll.u32 [#allocation8], 4
      %s1345 = int_to_ptr.vmem [resolvable:$true] %s1344
      %1350 = dma.vmem_to_hbm [thread:$0]  %s1345, 768, %s4, [#allocation4], 128, 128, 8
    $region33: #{tpu_custom_call.1} parent=1 // pred_fallthru
      _
    // Predicated region
    $region34: #{tpu_custom_call.1} parent=1 // pred_check
      _
    $region35: #{tpu_custom_call.1} parent=1 // pred_check_branch
      %1352 = sbr.rel (0) target = $region37
    $region36: #{tpu_custom_call.1} parent=1 // pred_region
      %1353 = dma.done [#allocation4], 768
    $region37: #{tpu_custom_call.1} parent=1 // pred_fallthru
      _
    %1354 = vsyncpa [#allocation3], 1
    %1355 = vsyncpa [#allocation6], 1
    %1356 = vsyncpa [#allocation4], 1

</llo_original>
